<compile_context>
chip_gen: v7x
topology: tpu7x:2x2x1
jax: 0.10.0
libtpu: 0.0.40
codegen_flags: <defaults>
</compile_context>

<pallas_src>
import functools
import math

import jax
import jax.numpy as jnp
from jax import lax
from jax.experimental import pallas as pl
from jax.experimental.pallas import tpu as pltpu


def _ffl_kernel(x_ref, dlh_ref, dll_ref, drh_ref, drl_ref, out_ref, acc_ref,
                *, alpha, log_matrix, n_batch, n_seg, seg_w, final_scale):
    i = pl.program_id(1)

    @pl.when(i == 0)
    def _():
        acc_ref[...] = jnp.zeros_like(acc_ref)

    dlh = dlh_ref[...]          # (2*ph, ph)  bf16 hi of scaled [cos_h; sin_h]
    dll = dll_ref[...]          # (2*ph, ph)  bf16 lo
    drh = drh_ref[...]          # (L, 2*L)    bf16 hi of [blkdiag(cw)|blkdiag(sw)]
    drl = drl_ref[...]          # (L, 2*L)    bf16 lo
    ph = dlh_ref.shape[1]
    L = drh_ref.shape[0]

    # Per-slab (segment) lane masks for the per-slab max normalization.
    lane = lax.broadcasted_iota(jnp.int32, (1, L), 1)
    seg_masks = [(lane >= s * seg_w) & (lane < (s + 1) * seg_w)
                 for s in range(n_seg)]

    def split_bf16(v):
        hi = v.astype(jnp.bfloat16)
        lo = (v - hi.astype(jnp.float32)).astype(jnp.bfloat16)
        return hi, lo

    def mm3(ah, al, bh, bl):
        # ~f32-accurate product from three native bf16 MXU passes.
        return (jnp.dot(ah, bh, preferred_element_type=jnp.float32)
                + jnp.dot(ah, bl, preferred_element_type=jnp.float32)
                + jnp.dot(al, bh, preferred_element_type=jnp.float32))

    partial = jnp.zeros((), jnp.float32)
    for b in range(n_batch):                        # static unroll
        xh, xl = split_bf16(x_ref[b])               # (ph, L)
        y = mm3(dlh, dll, xh, xl)                   # (2*ph, L) = scale*[Ch@x; Sh@x]
        yh, yl = split_bf16(y)
        z = mm3(yh, yl, drh, drl)                   # (2*ph, 2*L)
        re = z[:ph, :L] - z[ph:, L:]                # A@Cw - B@Sw
        im = z[:ph, L:] + z[ph:, :L]                # sign irrelevant (squared)
        dist = re * re + im * im                    # ortho |FFT(pred-target)|^2

        if alpha == 1.0:
            w = jnp.sqrt(dist)
        else:
            w = dist ** (0.5 * alpha)               # == sqrt(dist) ** alpha
        if log_matrix:
            w = jnp.log(w + 1.0)

        # Per-slab max, broadcast back over that slab's lanes; an all-zero slab
        # gives 0/0 -> NaN -> 0, matching the torch reference.
        divisor = jnp.zeros((1, L), jnp.float32)
        for s in range(n_seg):
            m = jnp.max(jnp.where(seg_masks[s], w, 0.0))
            divisor = divisor + jnp.where(seg_masks[s], m, 0.0)
        w = w / divisor
        w = jnp.where(jnp.isnan(w), 0.0, w)
        w = jnp.clip(w, 0.0, 1.0)

        partial = partial + jnp.sum(w * dist)

    acc_ref[...] += partial

    @pl.when(i == pl.num_programs(1) - 1)
    def _():
        out_ref[0] = acc_ref[...] * final_scale


def _split_bf16_host(x):
    hi = x.astype(jnp.bfloat16)
    lo = (x - hi.astype(jnp.float32)).astype(jnp.bfloat16)
    return hi, lo


def focal_frequency_loss(pred, target, *, loss_weight=1.0, alpha=1.0,
                         patch_factor=1, ave_spectrum=False,
                         log_matrix=False, batch_matrix=False):
    # TODO(synk): ave_spectrum / batch_matrix need a cross-slab (global) pass;
    # only the default (False) paths are implemented in-kernel.
    assert not ave_spectrum and not batch_matrix

    N, C, H, W = pred.shape
    pf = patch_factor
    assert H % pf == 0 and W % pf == 0
    ph, pw = H // pf, W // pf

    # FFT is linear: transform the difference once.
    d = pred.astype(jnp.float32) - target.astype(jnp.float32)
    d = d.reshape(N, C, pf, ph, pf, pw).transpose(0, 2, 4, 1, 3, 5)
    M = N * pf * pf * C
    d = d.reshape(M, ph, pw)

    # Lane packing: G slabs side by side along the 128-lane axis.
    G = max(1, 128 // pw)
    L = G * pw
    n_par = 2                                       # v7x megacore split; harmless elsewhere
    groups_real = -(-M // G)
    B = min(8, max(1, -(-groups_real // n_par)))    # slab-groups per grid step
    B = min(B, max(1, (2 * 1024 * 1024) // (ph * L * 4)))   # keep x-block <= ~2 MiB
    chunk = G * B * n_par
    M_pad = -(-M // chunk) * chunk
    if M_pad > M:
        # Zero slabs contribute exactly 0 to the loss.
        d = jnp.concatenate([d, jnp.zeros((M_pad - M, ph, pw), jnp.float32)], 0)
    n_groups = M_pad // G
    d = d.reshape(n_groups, G, ph, pw).transpose(0, 2, 1, 3).reshape(n_groups, ph, L)
    steps = (n_groups // B) // n_par

    # DFT bases: ortho scale folded into the left basis; fused cos/sin;
    # block-diagonal right basis for the lane-packed slabs.
    scale = 1.0 / math.sqrt(ph * pw)
    uh = jnp.arange(ph, dtype=jnp.float32)
    ang_h = 2.0 * jnp.pi * jnp.mod(jnp.outer(uh, uh), ph) / ph
    dl = jnp.concatenate([jnp.cos(ang_h), jnp.sin(ang_h)], axis=0) * scale     # (2*ph, ph)
    uw = jnp.arange(pw, dtype=jnp.float32)
    ang_w = 2.0 * jnp.pi * jnp.mod(jnp.outer(uw, uw), pw) / pw
    cw, sw = jnp.cos(ang_w), jnp.sin(ang_w)
    eye_g = jnp.eye(G, dtype=jnp.float32)
    dr = jnp.concatenate([jnp.kron(eye_g, cw), jnp.kron(eye_g, sw)], axis=1)   # (L, 2*L)
    dlh, dll = _split_bf16_host(dl)
    drh, drl = _split_bf16_host(dr)

    final_scale = loss_weight / float(M * ph * pw)

    kernel = functools.partial(
        _ffl_kernel, alpha=float(alpha), log_matrix=bool(log_matrix),
        n_batch=B, n_seg=G, seg_w=pw, final_scale=final_scale)

    out = pl.pallas_call(
        kernel,
        out_shape=jax.ShapeDtypeStruct((n_par, 1, 128), jnp.float32),
        grid_spec=pltpu.PrefetchScalarGridSpec(
            num_scalar_prefetch=0,
            grid=(n_par, steps),
            in_specs=[
                pl.BlockSpec((B, ph, L), lambda p, i: (p * steps + i, 0, 0)),
                pl.BlockSpec((2 * ph, ph), lambda p, i: (0, 0)),
                pl.BlockSpec((2 * ph, ph), lambda p, i: (0, 0)),
                pl.BlockSpec((L, 2 * L), lambda p, i: (0, 0)),
                pl.BlockSpec((L, 2 * L), lambda p, i: (0, 0)),
            ],
            out_specs=pl.BlockSpec((1, 1, 128), lambda p, i: (p, 0, 0)),
            scratch_shapes=[pltpu.VMEM((1, 128), jnp.float32)],
        ),
        compiler_params=pltpu.CompilerParams(
            dimension_semantics=("parallel", "arbitrary"),
            vmem_limit_bytes=48 * 1024 * 1024),
    )(d, dlh, dll, drh, drl)
    return jnp.sum(out[:, 0, 0])


def _reference_ffl(pred, target, *, loss_weight=1.0, alpha=1.0, patch_factor=1):
    """Plain-JAX mirror of the PyTorch module (default flags)."""
    N, C, H, W = pred.shape
    ph, pw = H // patch_factor, W // patch_factor

    def tensor2freq(x):
        x = x.reshape(N, C, patch_factor, ph, patch_factor, pw)
        y = x.transpose(0, 2, 4, 1, 3, 5).reshape(
            N, patch_factor * patch_factor, C, ph, pw)
        f = jnp.fft.fft2(y, norm='ortho')
        return jnp.stack([f.real, f.imag], -1)

    rf = tensor2freq(pred.astype(jnp.float32))
    tf = tensor2freq(target.astype(jnp.float32))
    dd = (rf - tf) ** 2
    dist = dd[..., 0] + dd[..., 1]
    w = jnp.sqrt(dist) ** alpha
    w = w / jnp.max(jnp.max(w, axis=-1), axis=-1)[:, :, :, None, None]
    w = jnp.where(jnp.isnan(w), 0.0, w)
    w = jnp.clip(w, 0.0, 1.0)
    return jnp.mean(w * dist) * loss_weight


if __name__ == "__main__":
    key = jax.random.PRNGKey(0)
    k1, k2 = jax.random.split(key)
    N, C, H, W = 2, 4, 16, 16
    pred = jax.random.normal(k1, (N, C, H, W), dtype=jnp.float32)
    target = jax.random.normal(k2, (N, C, H, W), dtype=jnp.float32)

    # patch_factor = 1 (16x16 DFT, 8 slabs packed into one 128-lane group)
    loss = jax.block_until_ready(
        focal_frequency_loss(pred, target, loss_weight=1.0, alpha=1.0,
                             patch_factor=1))
    ref = jax.block_until_ready(_reference_ffl(pred, target))
    assert abs(float(loss) - float(ref)) <= 1e-3 * max(1.0, abs(float(ref))), (
        float(loss), float(ref))

    # patch_factor = 2 (8x8 DFT, 16 slabs per 128-lane group)
    loss2 = jax.block_until_ready(
        focal_frequency_loss(pred, target, loss_weight=1.0, alpha=1.0,
                             patch_factor=2))
    ref2 = jax.block_until_ready(_reference_ffl(pred, target, patch_factor=2))
    assert abs(float(loss2) - float(ref2)) <= 1e-3 * max(1.0, abs(float(ref2))), (
        float(loss2), float(ref2))

    print("KERNEL_OK")
</pallas_src>

<mosaic_0001>
module attributes {stable_mosaic.version = 11 : i64} {
  func.func @_ffl_kernel(%arg0: i32, %arg1: i32, %arg2: memref<1x16x128xf32, #tpu.memory_space<vmem>>, %arg3: memref<32x16xbf16, #tpu.memory_space<vmem>>, %arg4: memref<32x16xbf16, #tpu.memory_space<vmem>>, %arg5: memref<128x256xbf16, #tpu.memory_space<vmem>>, %arg6: memref<128x256xbf16, #tpu.memory_space<vmem>>, %arg7: memref<1x1x128xf32, #tpu.memory_space<vmem>>, %arg8: memref<1x128xf32, #tpu.memory_space<vmem>>) attributes {dimension_semantics = [#tpu.dimension_semantics<parallel>, #tpu.dimension_semantics<arbitrary>], iteration_bounds = array<i64: 2, 1>, scalar_prefetch = 0 : i64, scratch_operands = 1 : i64, tpu.core_type = #tpu.core_type<tc>, window_params = [{transform_indices = @transform_0, window_bounds = array<i64: 1, 16, 128>}, {pipeline_mode = #tpu.pipeline_mode<synchronous>, transform_indices = @transform_1, window_bounds = array<i64: 32, 16>}, {pipeline_mode = #tpu.pipeline_mode<synchronous>, transform_indices = @transform_2, window_bounds = array<i64: 32, 16>}, {pipeline_mode = #tpu.pipeline_mode<synchronous>, transform_indices = @transform_3, window_bounds = array<i64: 128, 256>}, {pipeline_mode = #tpu.pipeline_mode<synchronous>, transform_indices = @transform_4, window_bounds = array<i64: 128, 256>}, {transform_indices = @transform_5, window_bounds = array<i64: 1, 1, 128>}]} {
    %c0_i32 = arith.constant 0 : i32
    %0 = arith.cmpi eq, %arg1, %c0_i32 : i32
    %1 = arith.extui %0 : i1 to i32
    %c0_i32_0 = arith.constant 0 : i32
    %2 = arith.cmpi ne, %1, %c0_i32_0 : i32
    scf.if %2 {
      %cst_60 = arith.constant 0.000000e+00 : f32
      %197 = vector.broadcast %cst_60 : f32 to vector<1x128xf32>
      %c0_61 = arith.constant 0 : index
      %c0_62 = arith.constant 0 : index
      %198 = vector.load %arg8[%c0_61, %c0_62] : memref<1x128xf32, #tpu.memory_space<vmem>>, vector<1x128xf32>
      tpu.vector_store %arg8[%c0_61, %c0_62], %197 {strides = array<i32>} : memref<1x128xf32, #tpu.memory_space<vmem>>, vector<1x128xf32>,
    } else {
    }
    %c0 = arith.constant 0 : index
    %c0_1 = arith.constant 0 : index
    %3 = vector.load %arg3[%c0, %c0_1] : memref<32x16xbf16, #tpu.memory_space<vmem>>, vector<32x16xbf16>
    %c0_2 = arith.constant 0 : index
    %c0_3 = arith.constant 0 : index
    %4 = vector.load %arg4[%c0_2, %c0_3] : memref<32x16xbf16, #tpu.memory_space<vmem>>, vector<32x16xbf16>
    %c0_4 = arith.constant 0 : index
    %c0_5 = arith.constant 0 : index
    %5 = vector.load %arg5[%c0_4, %c0_5] : memref<128x256xbf16, #tpu.memory_space<vmem>>, vector<128x256xbf16>
    %c0_6 = arith.constant 0 : index
    %c0_7 = arith.constant 0 : index
    %6 = vector.load %arg6[%c0_6, %c0_7] : memref<128x256xbf16, #tpu.memory_space<vmem>>, vector<128x256xbf16>
    %7 = tpu.iota {dimensions = array<i32: 1>} : vector<1x128xi32>
    %c0_i32_8 = arith.constant 0 : i32
    %8 = vector.broadcast %c0_i32_8 : i32 to vector<1x128xi32>
    %9 = arith.cmpi sge, %7, %8 : vector<1x128xi32>
    %c16_i32 = arith.constant 16 : i32
    %10 = vector.broadcast %c16_i32 : i32 to vector<1x128xi32>
    %11 = arith.cmpi slt, %7, %10 : vector<1x128xi32>
    %12 = arith.andi %9, %11 : vector<1x128xi1>
    %c16_i32_9 = arith.constant 16 : i32
    %13 = vector.broadcast %c16_i32_9 : i32 to vector<1x128xi32>
    %14 = arith.cmpi sge, %7, %13 : vector<1x128xi32>
    %c32_i32 = arith.constant 32 : i32
    %15 = vector.broadcast %c32_i32 : i32 to vector<1x128xi32>
    %16 = arith.cmpi slt, %7, %15 : vector<1x128xi32>
    %17 = arith.andi %14, %16 : vector<1x128xi1>
    %c32_i32_10 = arith.constant 32 : i32
    %18 = vector.broadcast %c32_i32_10 : i32 to vector<1x128xi32>
    %19 = arith.cmpi sge, %7, %18 : vector<1x128xi32>
    %c48_i32 = arith.constant 48 : i32
    %20 = vector.broadcast %c48_i32 : i32 to vector<1x128xi32>
    %21 = arith.cmpi slt, %7, %20 : vector<1x128xi32>
    %22 = arith.andi %19, %21 : vector<1x128xi1>
    %c48_i32_11 = arith.constant 48 : i32
    %23 = vector.broadcast %c48_i32_11 : i32 to vector<1x128xi32>
    %24 = arith.cmpi sge, %7, %23 : vector<1x128xi32>
    %c64_i32 = arith.constant 64 : i32
    %25 = vector.broadcast %c64_i32 : i32 to vector<1x128xi32>
    %26 = arith.cmpi slt, %7, %25 : vector<1x128xi32>
    %27 = arith.andi %24, %26 : vector<1x128xi1>
    %c64_i32_12 = arith.constant 64 : i32
    %28 = vector.broadcast %c64_i32_12 : i32 to vector<1x128xi32>
    %29 = arith.cmpi sge, %7, %28 : vector<1x128xi32>
    %c80_i32 = arith.constant 80 : i32
    %30 = vector.broadcast %c80_i32 : i32 to vector<1x128xi32>
    %31 = arith.cmpi slt, %7, %30 : vector<1x128xi32>
    %32 = arith.andi %29, %31 : vector<1x128xi1>
    %c80_i32_13 = arith.constant 80 : i32
    %33 = vector.broadcast %c80_i32_13 : i32 to vector<1x128xi32>
    %34 = arith.cmpi sge, %7, %33 : vector<1x128xi32>
    %c96_i32 = arith.constant 96 : i32
    %35 = vector.broadcast %c96_i32 : i32 to vector<1x128xi32>
    %36 = arith.cmpi slt, %7, %35 : vector<1x128xi32>
    %37 = arith.andi %34, %36 : vector<1x128xi1>
    %c96_i32_14 = arith.constant 96 : i32
    %38 = vector.broadcast %c96_i32_14 : i32 to vector<1x128xi32>
    %39 = arith.cmpi sge, %7, %38 : vector<1x128xi32>
    %c112_i32 = arith.constant 112 : i32
    %40 = vector.broadcast %c112_i32 : i32 to vector<1x128xi32>
    %41 = arith.cmpi slt, %7, %40 : vector<1x128xi32>
    %42 = arith.andi %39, %41 : vector<1x128xi1>
    %c112_i32_15 = arith.constant 112 : i32
    %43 = vector.broadcast %c112_i32_15 : i32 to vector<1x128xi32>
    %44 = arith.cmpi sge, %7, %43 : vector<1x128xi32>
    %c128_i32 = arith.constant 128 : i32
    %45 = vector.broadcast %c128_i32 : i32 to vector<1x128xi32>
    %46 = arith.cmpi slt, %7, %45 : vector<1x128xi32>
    %47 = arith.andi %44, %46 : vector<1x128xi1>
    %c0_16 = arith.constant 0 : index
    %c0_17 = arith.constant 0 : index
    %c0_18 = arith.constant 0 : index
    %48 = vector.load %arg2[%c0_16, %c0_17, %c0_18] : memref<1x16x128xf32, #tpu.memory_space<vmem>>, vector<1x16x128xf32>
    %49 = vector.shape_cast %48 : vector<1x16x128xf32> to vector<16x128xf32>
    %50 = arith.truncf %49 : vector<16x128xf32> to vector<16x128xbf16>
    %51 = arith.extf %50 : vector<16x128xbf16> to vector<16x128xf32>
    %52 = arith.subf %49, %51 : vector<16x128xf32>
    %53 = arith.truncf %52 : vector<16x128xf32> to vector<16x128xbf16>
    %cst = arith.constant dense<0.000000e+00> : vector<32x128xf32>
    %54 = tpu.matmul %3, %50, %cst {dimension_numbers = #tpu.dot_dimension_numbers<[1], [0], [0], [1], [0, 0, 1, 1], [], []>} : vector<32x16xbf16>, vector<16x128xbf16>, vector<32x128xf32> -> vector<32x128xf32>
    %cst_19 = arith.constant dense<0.000000e+00> : vector<32x128xf32>
    %55 = tpu.matmul %3, %53, %cst_19 {dimension_numbers = #tpu.dot_dimension_numbers<[1], [0], [0], [1], [0, 0, 1, 1], [], []>} : vector<32x16xbf16>, vector<16x128xbf16>, vector<32x128xf32> -> vector<32x128xf32>
    %56 = arith.addf %54, %55 : vector<32x128xf32>
    %cst_20 = arith.constant dense<0.000000e+00> : vector<32x128xf32>
    %57 = tpu.matmul %4, %50, %cst_20 {dimension_numbers = #tpu.dot_dimension_numbers<[1], [0], [0], [1], [0, 0, 1, 1], [], []>} : vector<32x16xbf16>, vector<16x128xbf16>, vector<32x128xf32> -> vector<32x128xf32>
    %58 = arith.addf %56, %57 : vector<32x128xf32>
    %59 = arith.truncf %58 : vector<32x128xf32> to vector<32x128xbf16>
    %60 = arith.extf %59 : vector<32x128xbf16> to vector<32x128xf32>
    %61 = arith.subf %58, %60 : vector<32x128xf32>
    %62 = arith.truncf %61 : vector<32x128xf32> to vector<32x128xbf16>
    %cst_21 = arith.constant dense<0.000000e+00> : vector<32x256xf32>
    %63 = tpu.matmul %59, %5, %cst_21 {dimension_numbers = #tpu.dot_dimension_numbers<[1], [0], [0], [1], [0, 0, 1, 1], [], []>} : vector<32x128xbf16>, vector<128x256xbf16>, vector<32x256xf32> -> vector<32x256xf32>
    %cst_22 = arith.constant dense<0.000000e+00> : vector<32x256xf32>
    %64 = tpu.matmul %59, %6, %cst_22 {dimension_numbers = #tpu.dot_dimension_numbers<[1], [0], [0], [1], [0, 0, 1, 1], [], []>} : vector<32x128xbf16>, vector<128x256xbf16>, vector<32x256xf32> -> vector<32x256xf32>
    %65 = arith.addf %63, %64 : vector<32x256xf32>
    %cst_23 = arith.constant dense<0.000000e+00> : vector<32x256xf32>
    %66 = tpu.matmul %62, %5, %cst_23 {dimension_numbers = #tpu.dot_dimension_numbers<[1], [0], [0], [1], [0, 0, 1, 1], [], []>} : vector<32x128xbf16>, vector<128x256xbf16>, vector<32x256xf32> -> vector<32x256xf32>
    %67 = arith.addf %65, %66 : vector<32x256xf32>
    %68 = vector.extract_strided_slice %67 {offsets = [0, 0], sizes = [16, 128], strides = [1, 1]} : vector<32x256xf32> to vector<16x128xf32>
    %69 = vector.extract_strided_slice %67 {offsets = [16, 128], sizes = [16, 128], strides = [1, 1]} : vector<32x256xf32> to vector<16x128xf32>
    %70 = arith.subf %68, %69 : vector<16x128xf32>
    %71 = vector.extract_strided_slice %67 {offsets = [0, 128], sizes = [16, 128], strides = [1, 1]} : vector<32x256xf32> to vector<16x128xf32>
    %72 = vector.extract_strided_slice %67 {offsets = [16, 0], sizes = [16, 128], strides = [1, 1]} : vector<32x256xf32> to vector<16x128xf32>
    %73 = arith.addf %71, %72 : vector<16x128xf32>
    %74 = arith.mulf %70, %70 : vector<16x128xf32>
    %75 = arith.mulf %73, %73 : vector<16x128xf32>
    %76 = arith.addf %74, %75 : vector<16x128xf32>
    %77 = math.sqrt %76 : vector<16x128xf32>
    %cst_24 = arith.constant 0.000000e+00 : f32
    %78 = vector.broadcast %cst_24 : f32 to vector<1x128xf32>
    %cst_25 = arith.constant 0.000000e+00 : f32
    %79 = vector.shape_cast %12 : vector<1x128xi1> to vector<1x128xi1>
    %80 = vector.broadcast %79 : vector<1x128xi1> to vector<16x128xi1>
    %81 = vector.broadcast %cst_25 : f32 to vector<16x128xf32>
    %82 = arith.select %80, %77, %81 : vector<16x128xi1>, vector<16x128xf32>
    %83 = vector.shape_cast %82 : vector<16x128xf32> to vector<1x16x128xf32>
    %cst_26 = arith.constant dense<0xFF800000> : vector<1xf32>
    %84 = vector.multi_reduction <maximumf>, %83, %cst_26 [1, 2] : vector<1x16x128xf32> to vector<1xf32>
    %85 = vector.shape_cast %84 : vector<1xf32> to vector<1x1x1xf32>
    %86 = vector.extract %85[0, 0, 0] : f32 from vector<1x1x1xf32>
    %cst_27 = arith.constant 0.000000e+00 : f32
    %87 = vector.broadcast %86 : f32 to vector<1x128xf32>
    %88 = vector.broadcast %cst_27 : f32 to vector<1x128xf32>
    %89 = arith.select %12, %87, %88 : vector<1x128xi1>, vector<1x128xf32>
    %90 = arith.addf %78, %89 : vector<1x128xf32>
    %cst_28 = arith.constant 0.000000e+00 : f32
    %91 = vector.shape_cast %17 : vector<1x128xi1> to vector<1x128xi1>
    %92 = vector.broadcast %91 : vector<1x128xi1> to vector<16x128xi1>
    %93 = vector.broadcast %cst_28 : f32 to vector<16x128xf32>
    %94 = arith.select %92, %77, %93 : vector<16x128xi1>, vector<16x128xf32>
    %95 = vector.shape_cast %94 : vector<16x128xf32> to vector<1x16x128xf32>
    %cst_29 = arith.constant dense<0xFF800000> : vector<1xf32>
    %96 = vector.multi_reduction <maximumf>, %95, %cst_29 [1, 2] : vector<1x16x128xf32> to vector<1xf32>
    %97 = vector.shape_cast %96 : vector<1xf32> to vector<1x1x1xf32>
    %98 = vector.extract %97[0, 0, 0] : f32 from vector<1x1x1xf32>
    %cst_30 = arith.constant 0.000000e+00 : f32
    %99 = vector.broadcast %98 : f32 to vector<1x128xf32>
    %100 = vector.broadcast %cst_30 : f32 to vector<1x128xf32>
    %101 = arith.select %17, %99, %100 : vector<1x128xi1>, vector<1x128xf32>
    %102 = arith.addf %90, %101 : vector<1x128xf32>
    %cst_31 = arith.constant 0.000000e+00 : f32
    %103 = vector.shape_cast %22 : vector<1x128xi1> to vector<1x128xi1>
    %104 = vector.broadcast %103 : vector<1x128xi1> to vector<16x128xi1>
    %105 = vector.broadcast %cst_31 : f32 to vector<16x128xf32>
    %106 = arith.select %104, %77, %105 : vector<16x128xi1>, vector<16x128xf32>
    %107 = vector.shape_cast %106 : vector<16x128xf32> to vector<1x16x128xf32>
    %cst_32 = arith.constant dense<0xFF800000> : vector<1xf32>
    %108 = vector.multi_reduction <maximumf>, %107, %cst_32 [1, 2] : vector<1x16x128xf32> to vector<1xf32>
    %109 = vector.shape_cast %108 : vector<1xf32> to vector<1x1x1xf32>
    %110 = vector.extract %109[0, 0, 0] : f32 from vector<1x1x1xf32>
    %cst_33 = arith.constant 0.000000e+00 : f32
    %111 = vector.broadcast %110 : f32 to vector<1x128xf32>
    %112 = vector.broadcast %cst_33 : f32 to vector<1x128xf32>
    %113 = arith.select %22, %111, %112 : vector<1x128xi1>, vector<1x128xf32>
    %114 = arith.addf %102, %113 : vector<1x128xf32>
    %cst_34 = arith.constant 0.000000e+00 : f32
    %115 = vector.shape_cast %27 : vector<1x128xi1> to vector<1x128xi1>
    %116 = vector.broadcast %115 : vector<1x128xi1> to vector<16x128xi1>
    %117 = vector.broadcast %cst_34 : f32 to vector<16x128xf32>
    %118 = arith.select %116, %77, %117 : vector<16x128xi1>, vector<16x128xf32>
    %119 = vector.shape_cast %118 : vector<16x128xf32> to vector<1x16x128xf32>
    %cst_35 = arith.constant dense<0xFF800000> : vector<1xf32>
    %120 = vector.multi_reduction <maximumf>, %119, %cst_35 [1, 2] : vector<1x16x128xf32> to vector<1xf32>
    %121 = vector.shape_cast %120 : vector<1xf32> to vector<1x1x1xf32>
    %122 = vector.extract %121[0, 0, 0] : f32 from vector<1x1x1xf32>
    %cst_36 = arith.constant 0.000000e+00 : f32
    %123 = vector.broadcast %122 : f32 to vector<1x128xf32>
    %124 = vector.broadcast %cst_36 : f32 to vector<1x128xf32>
    %125 = arith.select %27, %123, %124 : vector<1x128xi1>, vector<1x128xf32>
    %126 = arith.addf %114, %125 : vector<1x128xf32>
    %cst_37 = arith.constant 0.000000e+00 : f32
    %127 = vector.shape_cast %32 : vector<1x128xi1> to vector<1x128xi1>
    %128 = vector.broadcast %127 : vector<1x128xi1> to vector<16x128xi1>
    %129 = vector.broadcast %cst_37 : f32 to vector<16x128xf32>
    %130 = arith.select %128, %77, %129 : vector<16x128xi1>, vector<16x128xf32>
    %131 = vector.shape_cast %130 : vector<16x128xf32> to vector<1x16x128xf32>
    %cst_38 = arith.constant dense<0xFF800000> : vector<1xf32>
    %132 = vector.multi_reduction <maximumf>, %131, %cst_38 [1, 2] : vector<1x16x128xf32> to vector<1xf32>
    %133 = vector.shape_cast %132 : vector<1xf32> to vector<1x1x1xf32>
    %134 = vector.extract %133[0, 0, 0] : f32 from vector<1x1x1xf32>
    %cst_39 = arith.constant 0.000000e+00 : f32
    %135 = vector.broadcast %134 : f32 to vector<1x128xf32>
    %136 = vector.broadcast %cst_39 : f32 to vector<1x128xf32>
    %137 = arith.select %32, %135, %136 : vector<1x128xi1>, vector<1x128xf32>
    %138 = arith.addf %126, %137 : vector<1x128xf32>
    %cst_40 = arith.constant 0.000000e+00 : f32
    %139 = vector.shape_cast %37 : vector<1x128xi1> to vector<1x128xi1>
    %140 = vector.broadcast %139 : vector<1x128xi1> to vector<16x128xi1>
    %141 = vector.broadcast %cst_40 : f32 to vector<16x128xf32>
    %142 = arith.select %140, %77, %141 : vector<16x128xi1>, vector<16x128xf32>
    %143 = vector.shape_cast %142 : vector<16x128xf32> to vector<1x16x128xf32>
    %cst_41 = arith.constant dense<0xFF800000> : vector<1xf32>
    %144 = vector.multi_reduction <maximumf>, %143, %cst_41 [1, 2] : vector<1x16x128xf32> to vector<1xf32>
    %145 = vector.shape_cast %144 : vector<1xf32> to vector<1x1x1xf32>
    %146 = vector.extract %145[0, 0, 0] : f32 from vector<1x1x1xf32>
    %cst_42 = arith.constant 0.000000e+00 : f32
    %147 = vector.broadcast %146 : f32 to vector<1x128xf32>
    %148 = vector.broadcast %cst_42 : f32 to vector<1x128xf32>
    %149 = arith.select %37, %147, %148 : vector<1x128xi1>, vector<1x128xf32>
    %150 = arith.addf %138, %149 : vector<1x128xf32>
    %cst_43 = arith.constant 0.000000e+00 : f32
    %151 = vector.shape_cast %42 : vector<1x128xi1> to vector<1x128xi1>
    %152 = vector.broadcast %151 : vector<1x128xi1> to vector<16x128xi1>
    %153 = vector.broadcast %cst_43 : f32 to vector<16x128xf32>
    %154 = arith.select %152, %77, %153 : vector<16x128xi1>, vector<16x128xf32>
    %155 = vector.shape_cast %154 : vector<16x128xf32> to vector<1x16x128xf32>
    %cst_44 = arith.constant dense<0xFF800000> : vector<1xf32>
    %156 = vector.multi_reduction <maximumf>, %155, %cst_44 [1, 2] : vector<1x16x128xf32> to vector<1xf32>
    %157 = vector.shape_cast %156 : vector<1xf32> to vector<1x1x1xf32>
    %158 = vector.extract %157[0, 0, 0] : f32 from vector<1x1x1xf32>
    %cst_45 = arith.constant 0.000000e+00 : f32
    %159 = vector.broadcast %158 : f32 to vector<1x128xf32>
    %160 = vector.broadcast %cst_45 : f32 to vector<1x128xf32>
    %161 = arith.select %42, %159, %160 : vector<1x128xi1>, vector<1x128xf32>
    %162 = arith.addf %150, %161 : vector<1x128xf32>
    %cst_46 = arith.constant 0.000000e+00 : f32
    %163 = vector.shape_cast %47 : vector<1x128xi1> to vector<1x128xi1>
    %164 = vector.broadcast %163 : vector<1x128xi1> to vector<16x128xi1>
    %165 = vector.broadcast %cst_46 : f32 to vector<16x128xf32>
    %166 = arith.select %164, %77, %165 : vector<16x128xi1>, vector<16x128xf32>
    %167 = vector.shape_cast %166 : vector<16x128xf32> to vector<1x16x128xf32>
    %cst_47 = arith.constant dense<0xFF800000> : vector<1xf32>
    %168 = vector.multi_reduction <maximumf>, %167, %cst_47 [1, 2] : vector<1x16x128xf32> to vector<1xf32>
    %169 = vector.shape_cast %168 : vector<1xf32> to vector<1x1x1xf32>
    %170 = vector.extract %169[0, 0, 0] : f32 from vector<1x1x1xf32>
    %cst_48 = arith.constant 0.000000e+00 : f32
    %171 = vector.broadcast %170 : f32 to vector<1x128xf32>
    %172 = vector.broadcast %cst_48 : f32 to vector<1x128xf32>
    %173 = arith.select %47, %171, %172 : vector<1x128xi1>, vector<1x128xf32>
    %174 = arith.addf %162, %173 : vector<1x128xf32>
    %175 = vector.broadcast %174 : vector<1x128xf32> to vector<16x128xf32>
    %176 = arith.divf %77, %175 : vector<16x128xf32>
    %177 = arith.cmpf one, %176, %176 : vector<16x128xf32>
    %cst_49 = arith.constant 0.000000e+00 : f32
    %178 = vector.broadcast %cst_49 : f32 to vector<16x128xf32>
    %179 = arith.select %177, %178, %176 : vector<16x128xi1>, vector<16x128xf32>
    %cst_50 = arith.constant 0.000000e+00 : f32
    %cst_51 = arith.constant 1.000000e+00 : f32
    %180 = vector.broadcast %cst_50 : f32 to vector<16x128xf32>
    %181 = arith.maximumf %180, %179 : vector<16x128xf32>
    %182 = vector.broadcast %cst_51 : f32 to vector<16x128xf32>
    %183 = arith.minimumf %182, %181 : vector<16x128xf32>
    %184 = arith.mulf %183, %76 : vector<16x128xf32>
    %185 = vector.shape_cast %184 : vector<16x128xf32> to vector<1x16x128xf32>
    %cst_52 = arith.constant dense<0.000000e+00> : vector<1xf32>
    %186 = vector.multi_reduction <add>, %185, %cst_52 [1, 2] : vector<1x16x128xf32> to vector<1xf32>
    %187 = vector.shape_cast %186 : vector<1xf32> to vector<1x1x1xf32>
    %188 = vector.extract %187[0, 0, 0] : f32 from vector<1x1x1xf32>
    %cst_53 = arith.constant 0.000000e+00 : f32
    %189 = arith.addf %cst_53, %188 : f32
    %c0_54 = arith.constant 0 : index
    %c0_55 = arith.constant 0 : index
    %190 = vector.load %arg8[%c0_54, %c0_55] : memref<1x128xf32, #tpu.memory_space<vmem>>, vector<1x128xf32>
    %191 = vector.broadcast %189 : f32 to vector<1x128xf32>
    %192 = arith.addf %190, %191 : vector<1x128xf32>
    %c0_56 = arith.constant 0 : index
    %c0_57 = arith.constant 0 : index
    %193 = vector.load %arg8[%c0_56, %c0_57] : memref<1x128xf32, #tpu.memory_space<vmem>>, vector<1x128xf32>
    tpu.vector_store %arg8[%c0_56, %c0_57], %192 {strides = array<i32>} : memref<1x128xf32, #tpu.memory_space<vmem>>, vector<1x128xf32>,
    %c0_i32_58 = arith.constant 0 : i32
    %194 = arith.cmpi eq, %arg1, %c0_i32_58 : i32
    %195 = arith.extui %194 : i1 to i32
    %c0_i32_59 = arith.constant 0 : i32
    %196 = arith.cmpi ne, %195, %c0_i32_59 : i32
    scf.if %196 {
      %c0_60 = arith.constant 0 : index
      %c0_61 = arith.constant 0 : index
      %197 = vector.load %arg8[%c0_60, %c0_61] : memref<1x128xf32, #tpu.memory_space<vmem>>, vector<1x128xf32>
      %cst_62 = arith.constant 4.8828125E-4 : f32
      %198 = vector.broadcast %cst_62 : f32 to vector<1x128xf32>
      %199 = arith.mulf %197, %198 : vector<1x128xf32>
      %c0_63 = arith.constant 0 : index
      %c0_64 = arith.constant 0 : index
      %c0_65 = arith.constant 0 : index
      %200 = vector.load %arg7[%c0_63, %c0_64, %c0_65] : memref<1x1x128xf32, #tpu.memory_space<vmem>>, vector<1x1x128xf32>
      %201 = vector.shape_cast %200 : vector<1x1x128xf32> to vector<1x128xf32>
      %202 = vector.shape_cast %199 : vector<1x128xf32> to vector<1x1x128xf32>
      tpu.vector_store %arg7[%c0_63, %c0_64, %c0_65], %202 {strides = array<i32>} : memref<1x1x128xf32, #tpu.memory_space<vmem>>, vector<1x1x128xf32>,
    } else {
    }
    return
  }
  func.func @transform_0(%arg0: i32, %arg1: i32) -> (i32, i32, i32) {
    %c1_i32 = arith.constant 1 : i32
    %0 = arith.muli %arg0, %c1_i32 : i32
    %1 = arith.addi %0, %arg1 : i32
    %c0_i32 = arith.constant 0 : i32
    %c0_i32_0 = arith.constant 0 : i32
    %c0_i32_1 = arith.constant 0 : i32
    return %1, %c0_i32, %c0_i32_0 : i32, i32, i32
  }
  func.func @transform_1(%arg0: i32, %arg1: i32) -> (i32, i32) {
    %c0_i32 = arith.constant 0 : i32
    %c0_i32_0 = arith.constant 0 : i32
    %c0_i32_1 = arith.constant 0 : i32
    return %c0_i32, %c0_i32_0 : i32, i32
  }
  func.func @transform_2(%arg0: i32, %arg1: i32) -> (i32, i32) {
    %c0_i32 = arith.constant 0 : i32
    %c0_i32_0 = arith.constant 0 : i32
    %c0_i32_1 = arith.constant 0 : i32
    return %c0_i32, %c0_i32_0 : i32, i32
  }
  func.func @transform_3(%arg0: i32, %arg1: i32) -> (i32, i32) {
    %c0_i32 = arith.constant 0 : i32
    %c0_i32_0 = arith.constant 0 : i32
    %c0_i32_1 = arith.constant 0 : i32
    return %c0_i32, %c0_i32_0 : i32, i32
  }
  func.func @transform_4(%arg0: i32, %arg1: i32) -> (i32, i32) {
    %c0_i32 = arith.constant 0 : i32
    %c0_i32_0 = arith.constant 0 : i32
    %c0_i32_1 = arith.constant 0 : i32
    return %c0_i32, %c0_i32_0 : i32, i32
  }
  func.func @transform_5(%arg0: i32, %arg1: i32) -> (i32, i32, i32) {
    %c0_i32 = arith.constant 0 : i32
    %c0_i32_0 = arith.constant 0 : i32
    %c0_i32_1 = arith.constant 0 : i32
    return %arg0, %c0_i32, %c0_i32_0 : i32, i32, i32
  }
}

</mosaic_0001>

<llo_original>
// kernel: tpu_custom_call.1
$region0: #{tpu_custom_call.1}
  #allocation0 [shape = 'u32[]', space=smem, size = 0x4, offset = 0x4, fixed_abs, tag = 'smem constant byte address 0x4 - core index']
  #allocation1 [shape = 'u32[144,128]{1,0:T(1,128)}', space=vmem, size = 0x12000, scoped, tag = 'internal scratch']
  #allocation2 [shape = 'f32[1,128]{1,0:T(1,128)}', space=vmem, size = 0x200, scoped, tag = 'scratch operand']
  %s0 = inlined_call_operand.vmem [shape: f32[2,16,128], index: 0, kind: input, shape index: {}]
  %s1 = inlined_call_operand.vmem [shape: bf16[32,16], index: 1, kind: input, shape index: {}]
  %s2 = inlined_call_operand.vmem [shape: bf16[32,16], index: 2, kind: input, shape index: {}]
  %s3 = inlined_call_operand.hbm [shape: bf16[128,256], index: 3, kind: input, shape index: {}]
  %s4 = inlined_call_operand.hbm [shape: bf16[128,256], index: 4, kind: input, shape index: {}]
  %s5 = inlined_call_operand.hbm [shape: f32[2,1,128], index: 5, kind: output, shape index: {}]
  %s6 = sld [smem:[#allocation0]]
  $region69: #{tpu_custom_call.1} parent=0
    _
  %s8 = ssub.s32 1, %s6
  %s9 = scalar_select 0, %s8, %s6
  $region1: #{tpu_custom_call.1} parent=0
    #allocation3 [shape = 'u8[65536]{0}', space=vmem, size = 0x10000, scoped, tag = 'input window, operand 3, single buffered']
    #allocation4 [shape = 's32[2]{0}', space=sflag, size = 0x8, scoped, tag = 'scoped memory for tpu_custom_call.1']
    #allocation5 [shape = 's32[2]{0}', space=sflag, size = 0x8, scoped, tag = 'scoped memory for tpu_custom_call.1']
    #allocation6 [shape = 'u8[65536]{0}', space=vmem, size = 0x10000, scoped, tag = 'input window, operand 4, single buffered']
    #allocation7 [shape = 's32[1]{0}', space=sflag, size = 0x4, scoped, tag = 'scoped memory for tpu_custom_call.1']
    #allocation8 [shape = 'u8[1024]{0}', space=vmem, size = 0x400, scoped, tag = 'output window, operand 0']
    %10 = vsyncpa [#allocation4], 0
    %11 = vsyncpa [#allocation7], 0
    %12 = vsyncpa [#allocation5], 0
    %s13 = scalar_lea.sflag [#allocation5], 1
    %14 = vsyncpa %s13, 0
    loop: start=0, step=1, limit=4
    $region2: #{tpu_custom_call.1} parent=1 // loop_pre_header
      _
    $region3: #{tpu_custom_call.1} parent=1 // loop_header
      %s16 = sphi 0, %s20
      %p17 = scmp.ge.s32.totalorder %s16, 4
      %s23 = sphi 0, %s35
      %s24 = sphi 0, %s31
      %s25 = sphi 0, %s23
      %s26 = sphi 0, %s24
      %s27 = sphi 0, %s25
      %s28 = sphi 0, %s26
      %s40 = sphi 0, %s42
      %s43 = sphi 0, %s40
      %s44 = sphi 0, %s43
      %s60 = sphi 0, %s44
      %s64 = sphi 0, %s64
      %s66 = sphi 0, %s64
      %s67 = sphi 0, %s66
      %s81 = sphi 0, %s67
      %s85 = sphi 0, %s85
      %s87 = sphi 0, %s85
      %s88 = sphi 0, %s87
      %s102 = sphi 0, %s88
      %s106 = sphi 0, %s106
      %s108 = sphi 0, %s106
      %s109 = sphi 0, %s108
      %s123 = sphi 0, %s109
      %s127 = sphi 0, %s127
      %s129 = sphi 0, %s127
      %s130 = sphi 0, %s129
      %s144 = sphi 0, %s130
      %s150 = sphi 0, %s152
      %s153 = sphi 0, %s150
      %s154 = sphi 0, %s153
      %s170 = sphi 0, %s154
    $region4: #{tpu_custom_call.1} parent=1 // loop_header_branch
      %19 = sbr.rel (%p17) target = $region8
    $region5: #{tpu_custom_call.1} parent=1 // loop_body
      %s21 = ssub.s32 %s16, 1
      %s22 = ssub.s32 %s16, 2
      %s29 = sadd.s32 1, %s24
      %p30 = scmp.ge.s32.totalorder %s29, 1
      %s31 = scalar_select %p30, 0, %s29
      %s32 = sadd.s32 1, %s23
      %s33 = scalar_select %p30, %s32, %s23
      %p34 = scmp.ge.s32.totalorder %s33, 2
      %s35 = scalar_select %p34, 0, %s33
      %s36 = sadd.s32 %s23, %s24
      %s37 = sadd.s32 %s35, %s31
      %s38 = ssub.s32 %s36, %s37
      %p39 = scmp.eq.s32.totalorder %s38, 0
      %s41 = sadd.s32 %s40, 1
      %s42 = scalar_select %p39, %s40, %s41
      %p45 = pneg %p39
      %p46 = scmp.eq.s32.totalorder %s16, 1
      %p47 = por %p45, %p46
      %p48 = scmp.ne.s32.totalorder %s40, %s43
      %p49 = scmp.eq.s32.totalorder %s16, 0
      %p50 = por %p48, %p49
      %p51 = scmp.ne.s32.totalorder %s40, %s43
      %p52 = scmp.eq.s32.totalorder %s21, 1
      %p53 = por %p51, %p52
      %p54 = scmp.ne.s32.totalorder %s43, %s44
      %p55 = scmp.eq.s32.totalorder %s21, 0
      %p56 = por %p54, %p55
      %p57 = scmp.ne.s32.totalorder %s43, %s44
      %p58 = scmp.eq.s32.totalorder %s22, 1
      %p59 = por %p57, %p58
      %p61 = scmp.ne.s32.totalorder %s44, %s60
      %p62 = scmp.eq.s32.totalorder %s22, 0
      %p63 = por %p61, %p62
      %s65 = sadd.s32 %s64, 1
      %p68 = scmp.eq.s32.totalorder %s16, 1
      %p69 = scmp.ne.s32.totalorder %s64, %s66
      %p70 = scmp.eq.s32.totalorder %s16, 0
      %p71 = por %p69, %p70
      %p72 = scmp.ne.s32.totalorder %s64, %s66
      %p73 = scmp.eq.s32.totalorder %s21, 1
      %p74 = por %p72, %p73
      %p75 = scmp.ne.s32.totalorder %s66, %s67
      %p76 = scmp.eq.s32.totalorder %s21, 0
      %p77 = por %p75, %p76
      %p78 = scmp.ne.s32.totalorder %s66, %s67
      %p79 = scmp.eq.s32.totalorder %s22, 1
      %p80 = por %p78, %p79
      %p82 = scmp.ne.s32.totalorder %s67, %s81
      %p83 = scmp.eq.s32.totalorder %s22, 0
      %p84 = por %p82, %p83
      %s86 = sadd.s32 %s85, 1
      %p89 = scmp.eq.s32.totalorder %s16, 1
      %p90 = scmp.ne.s32.totalorder %s85, %s87
      %p91 = scmp.eq.s32.totalorder %s16, 0
      %p92 = por %p90, %p91
      %p93 = scmp.ne.s32.totalorder %s85, %s87
      %p94 = scmp.eq.s32.totalorder %s21, 1
      %p95 = por %p93, %p94
      %p96 = scmp.ne.s32.totalorder %s87, %s88
      %p97 = scmp.eq.s32.totalorder %s21, 0
      %p98 = por %p96, %p97
      %p99 = scmp.ne.s32.totalorder %s87, %s88
      %p100 = scmp.eq.s32.totalorder %s22, 1
      %p101 = por %p99, %p100
      %p103 = scmp.ne.s32.totalorder %s88, %s102
      %p104 = scmp.eq.s32.totalorder %s22, 0
      %p105 = por %p103, %p104
      %s107 = sadd.s32 %s106, 1
      %p110 = scmp.eq.s32.totalorder %s16, 1
      %p111 = scmp.ne.s32.totalorder %s106, %s108
      %p112 = scmp.eq.s32.totalorder %s16, 0
      %p113 = por %p111, %p112
      %p114 = scmp.ne.s32.totalorder %s106, %s108
      %p115 = scmp.eq.s32.totalorder %s21, 1
      %p116 = por %p114, %p115
      %p117 = scmp.ne.s32.totalorder %s108, %s109
      %p118 = scmp.eq.s32.totalorder %s21, 0
      %p119 = por %p117, %p118
      %p120 = scmp.ne.s32.totalorder %s108, %s109
      %p121 = scmp.eq.s32.totalorder %s22, 1
      %p122 = por %p120, %p121
      %p124 = scmp.ne.s32.totalorder %s109, %s123
      %p125 = scmp.eq.s32.totalorder %s22, 0
      %p126 = por %p124, %p125
      %s128 = sadd.s32 %s127, 1
      %p131 = scmp.eq.s32.totalorder %s16, 1
      %p132 = scmp.ne.s32.totalorder %s127, %s129
      %p133 = scmp.eq.s32.totalorder %s16, 0
      %p134 = por %p132, %p133
      %p135 = scmp.ne.s32.totalorder %s127, %s129
      %p136 = scmp.eq.s32.totalorder %s21, 1
      %p137 = por %p135, %p136
      %p138 = scmp.ne.s32.totalorder %s129, %s130
      %p139 = scmp.eq.s32.totalorder %s21, 0
      %p140 = por %p138, %p139
      %p141 = scmp.ne.s32.totalorder %s129, %s130
      %p142 = scmp.eq.s32.totalorder %s22, 1
      %p143 = por %p141, %p142
      %p145 = scmp.ne.s32.totalorder %s130, %s144
      %p146 = scmp.eq.s32.totalorder %s22, 0
      %p147 = por %p145, %p146
      %s148 = ssub.s32 %s23, %s35
      %p149 = scmp.eq.s32.totalorder %s148, 0
      %s151 = sadd.s32 %s150, 1
      %s152 = scalar_select %p149, %s150, %s151
      %p155 = pneg %p149
      %p156 = scmp.eq.s32.totalorder %s16, 1
      %p157 = por %p155, %p156
      %p158 = scmp.ne.s32.totalorder %s150, %s153
      %p159 = scmp.eq.s32.totalorder %s16, 0
      %p160 = por %p158, %p159
      %p161 = scmp.ne.s32.totalorder %s150, %s153
      %p162 = scmp.eq.s32.totalorder %s21, 1
      %p163 = por %p161, %p162
      %p164 = scmp.ne.s32.totalorder %s153, %s154
      %p165 = scmp.eq.s32.totalorder %s21, 0
      %p166 = por %p164, %p165
      %p167 = scmp.ne.s32.totalorder %s153, %s154
      %p168 = scmp.eq.s32.totalorder %s22, 1
      %p169 = por %p167, %p168
      %p171 = scmp.ne.s32.totalorder %s154, %s170
      %p172 = scmp.eq.s32.totalorder %s22, 0
      %p173 = por %p171, %p172
      %p174 = scmp.le.s32.totalorder 1, %s16
      %p175 = scmp.lt.s32.totalorder %s16, 3
      %p176 = pnand %p174, %p175
      %p177 = pneg %p176
      // Predicated region
      $region9: #{tpu_custom_call.1} parent=5 // pred_check
        _
      $region10: #{tpu_custom_call.1} parent=5 // pred_check_branch
        %179 = sbr.rel (%p176) target = $region12
      $region11: #{tpu_custom_call.1} parent=5 // pred_region
        %s180 = ssub.s32 %s16, 1
        // Predicated region
        $region13: #{tpu_custom_call.1} parent=11 // pred_check
          %p181 = pneg %p77
        $region14: #{tpu_custom_call.1} parent=11 // pred_check_branch
          %183 = sbr.rel (%p181) target = $region16
        $region15: #{tpu_custom_call.1} parent=11 // pred_region
          _
        $region16: #{tpu_custom_call.1} parent=11 // pred_fallthru
          _
        // Predicated region
        $region17: #{tpu_custom_call.1} parent=11 // pred_check
          %p184 = pneg %p98
        $region18: #{tpu_custom_call.1} parent=11 // pred_check_branch
          %186 = sbr.rel (%p184) target = $region20
        $region19: #{tpu_custom_call.1} parent=11 // pred_region
          _
        $region20: #{tpu_custom_call.1} parent=11 // pred_fallthru
          _
        // Predicated region
        $region21: #{tpu_custom_call.1} parent=11 // pred_check
          %p187 = pneg %p119
        $region22: #{tpu_custom_call.1} parent=11 // pred_check_branch
          %189 = sbr.rel (%p187) target = $region24
        $region23: #{tpu_custom_call.1} parent=11 // pred_region
          %s191 = ssub.s32 2048, 2048
          %192 = vsyncadd [#allocation4], %s191
          %s193 = sshll.u32 [#allocation3], 4
          %s194 = int_to_ptr.vmem [resolvable:$true] %s193
          %199 = dma.hbm_to_vmem [thread:$0]  %s3, 2048, %s194, [#allocation4], 128, 128, 8
        $region24: #{tpu_custom_call.1} parent=11 // pred_fallthru
          _
        // Predicated region
        $region25: #{tpu_custom_call.1} parent=11 // pred_check
          %p200 = pneg %p140
        $region26: #{tpu_custom_call.1} parent=11 // pred_check_branch
          %202 = sbr.rel (%p200) target = $region28
        $region27: #{tpu_custom_call.1} parent=11 // pred_region
          %s204 = ssub.s32 2048, 2048
          %205 = vsyncadd [#allocation7], %s204
          %s206 = sshll.u32 [#allocation6], 4
          %s207 = int_to_ptr.vmem [resolvable:$true] %s206
          %212 = dma.hbm_to_vmem [thread:$0]  %s4, 2048, %s207, [#allocation7], 128, 128, 8
        $region28: #{tpu_custom_call.1} parent=11 // pred_fallthru
          _
      $region12: #{tpu_custom_call.1} parent=5 // pred_fallthru
        _
      %p213 = scmp.lt.s32.totalorder %s16, 2
      // Predicated region
      $region29: #{tpu_custom_call.1} parent=5 // pred_check
        %p214 = pneg %p213
      $region30: #{tpu_custom_call.1} parent=5 // pred_check_branch
        %216 = sbr.rel (%p214) target = $region32
      $region31: #{tpu_custom_call.1} parent=5 // pred_region
        // Predicated region
        $region33: #{tpu_custom_call.1} parent=31 // pred_check
          %p217 = pneg %p50
        $region34: #{tpu_custom_call.1} parent=31 // pred_check_branch
          %219 = sbr.rel (%p217) target = $region36
        $region35: #{tpu_custom_call.1} parent=31 // pred_region
          %s220 = sadd.s32 %s23, %s24
          %p221 = scmp.lt.s32.totalorder %s220, 1
          %s222 = scalar_select %p221, %s220, 1
          %s223 = smul.addr %s222, 2
          %s224 = smul.addr %s223, 8
          %s225 = scalar_lea.vmem %s0, %s224
          %s226 = sadd.s32 %s23, %s24
        $region36: #{tpu_custom_call.1} parent=31 // pred_fallthru
          _
      $region32: #{tpu_custom_call.1} parent=5 // pred_fallthru
        _
      %p227 = scmp.le.s32.totalorder 1, %s16
      %p228 = scmp.lt.s32.totalorder %s16, 3
      %p229 = pnand %p227, %p228
      %p230 = pneg %p229
      // Predicated region
      $region37: #{tpu_custom_call.1} parent=5 // pred_check
        _
      $region38: #{tpu_custom_call.1} parent=5 // pred_check_branch
        %232 = sbr.rel (%p229) target = $region40
      $region39: #{tpu_custom_call.1} parent=5 // pred_region
        %s233 = ssub.s32 %s16, 1
        // Predicated region
        $region41: #{tpu_custom_call.1} parent=39 // pred_check
          %p234 = pneg %p119
        $region42: #{tpu_custom_call.1} parent=39 // pred_check_branch
          %236 = sbr.rel (%p234) target = $region44
        $region43: #{tpu_custom_call.1} parent=39 // pred_region
          %237 = dma.done [#allocation4], 2048
        $region44: #{tpu_custom_call.1} parent=39 // pred_fallthru
          _
        // Predicated region
        $region45: #{tpu_custom_call.1} parent=39 // pred_check
          %p238 = pneg %p140
        $region46: #{tpu_custom_call.1} parent=39 // pred_check_branch
          %240 = sbr.rel (%p238) target = $region48
        $region47: #{tpu_custom_call.1} parent=39 // pred_region
          %241 = dma.done [#allocation7], 2048
        $region48: #{tpu_custom_call.1} parent=39 // pred_fallthru
          _
        %s242 = sadd.s32 %s25, %s26
        %p243 = scmp.lt.s32.totalorder %s242, 1
        %s244 = scalar_select %p243, %s242, 1
        %s245 = smul.addr %s244, 2
        %s246 = smul.addr %s245, 8
        %s247 = scalar_lea.vmem %s0, %s246
        %p248 = pneg %p56
        %p249 = pneg %p53
        %p250 = pneg %p77
        %p251 = pneg %p74
        %p252 = pneg %p98
        %p253 = pneg %p95
        %p254 = pneg %p119
        %p255 = pneg %p116
        %p256 = pneg %p140
        %p257 = pneg %p137
        %p258 = pneg %p166
        %p259 = pneg %p163
        %s260 = sand.u32 %s153, 1
        %s261 = scalar_lea.sflag [#allocation5], %s260
        %s262 = sand.u32 %s153, 1
        %s263 = scalar_lea.vmem [#allocation8], %s262
        %s264 = sadd.s32 %s25, %s26
        %p265 = scmp.lt.s32.totalorder %s264, 1
        %s266 = scalar_select %p265, %s264, 1
        %s267 = smul.addr %s266, 2
        %s268 = smul.addr %s267, 8
        %s269 = scalar_lea.vmem %s0, %s268
        %s270 = sadd.s32 %s25, %s26
        %p272 = scmp.eq.s32.totalorder %s26, 0
        // Predicated region
        $region49: #{tpu_custom_call.1} parent=39 // pred_check
          %p273 = pneg %p272
        $region50: #{tpu_custom_call.1} parent=39 // pred_check_branch
          %275 = sbr.rel (%p273) target = $region52
        $region51: #{tpu_custom_call.1} parent=39 // pred_region
          %276 = vst [vmem:[#allocation2] sm:$0x1] 0.0
        $region52: #{tpu_custom_call.1} parent=39 // pred_fallthru
          _
        %v277 = vld [vmem:[%s1] sm:$0xf]
        %v278 = vld [vmem:[%s1 + $0x4] sm:$0xf]
        %v279 = vld [vmem:[%s1 + $0x8] sm:$0xf]
        %v280 = vld [vmem:[%s1 + $0xc] sm:$0xf]
        %v281 = vld [vmem:[%s2] sm:$0xf]
        %v282 = vld [vmem:[%s2 + $0x4] sm:$0xf]
        %v283 = vld [vmem:[%s2 + $0x8] sm:$0xf]
        %v284 = vld [vmem:[%s2 + $0xc] sm:$0xf]
        %v285 = vld [vmem:[#allocation3] sm:$0xff]
        %v286 = vld [vmem:[#allocation3 + $0x8] sm:$0xff]
        %v287 = vld [vmem:[#allocation3 + $0x10] sm:$0xff]
        %v288 = vld [vmem:[#allocation3 + $0x18] sm:$0xff]
        %v289 = vld [vmem:[#allocation3 + $0x20] sm:$0xff]
        %v290 = vld [vmem:[#allocation3 + $0x28] sm:$0xff]
        %v291 = vld [vmem:[#allocation3 + $0x30] sm:$0xff]
        %v292 = vld [vmem:[#allocation3 + $0x38] sm:$0xff]
        %v293 = vld [vmem:[#allocation3 + $0x40] sm:$0xff]
        %v294 = vld [vmem:[#allocation3 + $0x48] sm:$0xff]
        %v295 = vld [vmem:[#allocation3 + $0x50] sm:$0xff]
        %v296 = vld [vmem:[#allocation3 + $0x58] sm:$0xff]
        %v297 = vld [vmem:[#allocation3 + $0x60] sm:$0xff]
        %v298 = vld [vmem:[#allocation3 + $0x68] sm:$0xff]
        %v299 = vld [vmem:[#allocation3 + $0x70] sm:$0xff]
        %v300 = vld [vmem:[#allocation3 + $0x78] sm:$0xff]
        %v301 = vld [vmem:[#allocation6] sm:$0xff]
        %v302 = vld [vmem:[#allocation6 + $0x8] sm:$0xff]
        %v303 = vld [vmem:[#allocation6 + $0x10] sm:$0xff]
        %v304 = vld [vmem:[#allocation6 + $0x18] sm:$0xff]
        %v305 = vld [vmem:[#allocation6 + $0x20] sm:$0xff]
        %v306 = vld [vmem:[#allocation6 + $0x28] sm:$0xff]
        %v307 = vld [vmem:[#allocation6 + $0x30] sm:$0xff]
        %v308 = vld [vmem:[#allocation6 + $0x38] sm:$0xff]
        %v309 = vld [vmem:[#allocation6 + $0x40] sm:$0xff]
        %v310 = vld [vmem:[#allocation6 + $0x48] sm:$0xff]
        %v311 = vld [vmem:[#allocation6 + $0x50] sm:$0xff]
        %v312 = vld [vmem:[#allocation6 + $0x58] sm:$0xff]
        %v313 = vld [vmem:[#allocation6 + $0x60] sm:$0xff]
        %v314 = vld [vmem:[#allocation6 + $0x68] sm:$0xff]
        %v315 = vld [vmem:[#allocation6 + $0x70] sm:$0xff]
        %v316 = vld [vmem:[#allocation6 + $0x78] sm:$0xff]
        %v317 = vlaneseq
        %v318 = vand.u32 %v317, 127
        %vm319 = vcmp.ge.s32.totalorder %v318, 0
        %vm320 = vcmp.lt.s32.totalorder %v318, 16
        %vm321 = vmand %vm319, %vm320
        %vm322 = vcmp.ge.s32.totalorder %v318, 16
        %vm323 = vcmp.lt.s32.totalorder %v318, 32
        %vm324 = vmand %vm322, %vm323
        %vm325 = vcmp.ge.s32.totalorder %v318, 32
        %vm326 = vcmp.lt.s32.totalorder %v318, 48
        %vm327 = vmand %vm325, %vm326
        %vm328 = vcmp.ge.s32.totalorder %v318, 48
        %vm329 = vcmp.lt.s32.totalorder %v318, 64
        %vm330 = vmand %vm328, %vm329
        %vm331 = vcmp.ge.s32.totalorder %v318, 64
        %vm332 = vcmp.lt.s32.totalorder %v318, 80
        %vm333 = vmand %vm331, %vm332
        %vm334 = vcmp.ge.s32.totalorder %v318, 80
        %vm335 = vcmp.lt.s32.totalorder %v318, 96
        %vm336 = vmand %vm334, %vm335
        %vm337 = vcmp.ge.s32.totalorder %v318, 96
        %vm338 = vcmp.lt.s32.totalorder %v318, 112
        %vm339 = vmand %vm337, %vm338
        %vm340 = vcmp.ge.s32.totalorder %v318, 112
        %vm341 = vcmp.lt.s32.totalorder %v318, 128
        %vm342 = vmand %vm340, %vm341
        %v343 = vld [vmem:[%s269] sm:$0xff]
        %v344 = vld [vmem:[%s269 + $0x8] sm:$0xff]
        %v345 = vpack.c.bf16 %v344, %v343
        %v346 = vunpack.c.l.bf16 %v345
        %v347 = vunpack.c.h.bf16 %v345
        %v348 = vsub.f32 %v343, %v346
        %v349 = vsub.f32 %v344, %v347
        %v350 = vpack.c.bf16 %v349, %v348
        %v355 = vunpack.c.l.b16 %v277
        %v356 = vunpack.c.l.b16 %v278
        %v357 = vunpack.c.l.b16 %v279
        %v358 = vunpack.c.l.b16 %v280
        %v359 = vpack.c.b16 %v356, %v355
        %v360 = vpack.c.b16 %v358, %v357
        %vm361 = vcmask 130048
        %v363 = vsel %vm361, %v359, 0
        %v366 = vsel %vm361, %v360, 0
        %368 = vmatprep.subr.bf16.mxu0 0
        %369 = vmatpush1.bf16.msra.mxu0 %v350
        %370 = vmatprep.subr.bf16.mxu0 0
        %371 = vmatpush1.bf16.msra.mxu0 0
        %372 = vmatprep.subr.bf16.mxu0 0
        %373 = vmatpush1.bf16.msra.mxu0 0
        %374 = vmatprep.subr.bf16.mxu0 0
        %375 = vmatpush1.bf16.msra.mxu0 0
        %376 = vmatprep.subr.bf16.mxu0 0
        %377 = vmatpush1.bf16.msra.mxu0 0
        %378 = vmatprep.subr.bf16.mxu0 0
        %379 = vmatpush1.bf16.msra.mxu0 0
        %380 = vmatprep.subr.bf16.mxu0 0
        %381 = vmatpush1.bf16.msra.mxu0 0
        %382 = vmatprep.subr.bf16.mxu0 0
        %383 = vmatpush1.bf16.msra.mxu0 0
        %384 = vmatprep.subr.bf16.mxu0 0
        %385 = vmatpush1.bf16.msra.mxu0 0
        %386 = vmatprep.subr.bf16.mxu0 0
        %387 = vmatpush1.bf16.msra.mxu0 0
        %388 = vmatprep.subr.bf16.mxu0 0
        %389 = vmatpush1.bf16.msra.mxu0 0
        %390 = vmatprep.subr.bf16.mxu0 0
        %391 = vmatpush1.bf16.msra.mxu0 0
        %392 = vmatprep.subr.bf16.mxu0 0
        %393 = vmatpush1.bf16.msra.mxu0 0
        %394 = vmatprep.subr.bf16.mxu0 0
        %395 = vmatpush1.bf16.msra.mxu0 0
        %396 = vmatprep.subr.bf16.mxu0 0
        %397 = vmatpush1.bf16.msra.mxu0 0
        %398 = vmatprep.subr.bf16.mxu0 0
        %399 = vmatpush1.bf16.msra.mxu0 0
        %400 = vmatprep.mubr.bf16.mxu0 0
        %401 = vmatmul.mubr.bf16.gmra.mrb[0].mxu0 %v363
        %v402 = vpop.f32.mrb[0].mxu0
        %v403 = vadd.f32 0.0, %v402
        %v404 = vpop.f32.mrb[0].mxu0
        %v405 = vpop.f32.mrb[0].mxu0
        %v406 = vadd.f32 0.0, %v405
        %v407 = vpop.f32.mrb[0].mxu0
        %408 = vmatprep.mubr.bf16.mxu0 0
        %409 = vmatmul.mubr.bf16.gmra.mrb[0].mxu0 %v366
        %v410 = vpop.f32.mrb[0].mxu0
        %v411 = vadd.f32 0.0, %v410
        %v412 = vpop.f32.mrb[0].mxu0
        %v413 = vpop.f32.mrb[0].mxu0
        %v414 = vadd.f32 0.0, %v413
        %v415 = vpop.f32.mrb[0].mxu0
        %416 = vdwg.mxu0
        %417 = vmatprep.subr.bf16.mxu0 0
        %418 = vmatpush1.bf16.msra.mxu0 %v345
        %419 = vmatprep.subr.bf16.mxu0 0
        %420 = vmatpush1.bf16.msra.mxu0 0
        %421 = vmatprep.subr.bf16.mxu0 0
        %422 = vmatpush1.bf16.msra.mxu0 0
        %423 = vmatprep.subr.bf16.mxu0 0
        %424 = vmatpush1.bf16.msra.mxu0 0
        %425 = vmatprep.subr.bf16.mxu0 0
        %426 = vmatpush1.bf16.msra.mxu0 0
        %427 = vmatprep.subr.bf16.mxu0 0
        %428 = vmatpush1.bf16.msra.mxu0 0
        %429 = vmatprep.subr.bf16.mxu0 0
        %430 = vmatpush1.bf16.msra.mxu0 0
        %431 = vmatprep.subr.bf16.mxu0 0
        %432 = vmatpush1.bf16.msra.mxu0 0
        %433 = vmatprep.subr.bf16.mxu0 0
        %434 = vmatpush1.bf16.msra.mxu0 0
        %435 = vmatprep.subr.bf16.mxu0 0
        %436 = vmatpush1.bf16.msra.mxu0 0
        %437 = vmatprep.subr.bf16.mxu0 0
        %438 = vmatpush1.bf16.msra.mxu0 0
        %439 = vmatprep.subr.bf16.mxu0 0
        %440 = vmatpush1.bf16.msra.mxu0 0
        %441 = vmatprep.subr.bf16.mxu0 0
        %442 = vmatpush1.bf16.msra.mxu0 0
        %443 = vmatprep.subr.bf16.mxu0 0
        %444 = vmatpush1.bf16.msra.mxu0 0
        %445 = vmatprep.subr.bf16.mxu0 0
        %446 = vmatpush1.bf16.msra.mxu0 0
        %447 = vmatprep.subr.bf16.mxu0 0
        %448 = vmatpush1.bf16.msra.mxu0 0
        %449 = vmatprep.mubr.bf16.mxu0 0
        %450 = vmatmul.mubr.bf16.gmra.mrb[0].mxu0 %v363
        %v451 = vpop.f32.mrb[0].mxu0
        %v452 = vadd.f32 %v403, %v451
        %v453 = vpop.f32.mrb[0].mxu0
        %v454 = vpop.f32.mrb[0].mxu0
        %v455 = vadd.f32 %v406, %v454
        %v456 = vpop.f32.mrb[0].mxu0
        %457 = vmatprep.mubr.bf16.mxu0 0
        %458 = vmatmul.mubr.bf16.gmra.mrb[0].mxu0 %v366
        %v459 = vpop.f32.mrb[0].mxu0
        %v460 = vadd.f32 %v411, %v459
        %v461 = vpop.f32.mrb[0].mxu0
        %v462 = vpop.f32.mrb[0].mxu0
        %v463 = vadd.f32 %v414, %v462
        %v464 = vpop.f32.mrb[0].mxu0
        %465 = vdwg.mxu0
        %v470 = vunpack.c.l.b16 %v281
        %v471 = vunpack.c.l.b16 %v282
        %v472 = vunpack.c.l.b16 %v283
        %v473 = vunpack.c.l.b16 %v284
        %v474 = vpack.c.b16 %v471, %v470
        %v475 = vpack.c.b16 %v473, %v472
        %v477 = vsel %vm361, %v474, 0
        %v480 = vsel %vm361, %v475, 0
        %482 = vmatprep.subr.bf16.mxu0 0
        %483 = vmatpush1.bf16.msra.mxu0 %v345
        %484 = vmatprep.subr.bf16.mxu0 0
        %485 = vmatpush1.bf16.msra.mxu0 0
        %486 = vmatprep.subr.bf16.mxu0 0
        %487 = vmatpush1.bf16.msra.mxu0 0
        %488 = vmatprep.subr.bf16.mxu0 0
        %489 = vmatpush1.bf16.msra.mxu0 0
        %490 = vmatprep.subr.bf16.mxu0 0
        %491 = vmatpush1.bf16.msra.mxu0 0
        %492 = vmatprep.subr.bf16.mxu0 0
        %493 = vmatpush1.bf16.msra.mxu0 0
        %494 = vmatprep.subr.bf16.mxu0 0
        %495 = vmatpush1.bf16.msra.mxu0 0
        %496 = vmatprep.subr.bf16.mxu0 0
        %497 = vmatpush1.bf16.msra.mxu0 0
        %498 = vmatprep.subr.bf16.mxu0 0
        %499 = vmatpush1.bf16.msra.mxu0 0
        %500 = vmatprep.subr.bf16.mxu0 0
        %501 = vmatpush1.bf16.msra.mxu0 0
        %502 = vmatprep.subr.bf16.mxu0 0
        %503 = vmatpush1.bf16.msra.mxu0 0
        %504 = vmatprep.subr.bf16.mxu0 0
        %505 = vmatpush1.bf16.msra.mxu0 0
        %506 = vmatprep.subr.bf16.mxu0 0
        %507 = vmatpush1.bf16.msra.mxu0 0
        %508 = vmatprep.subr.bf16.mxu0 0
        %509 = vmatpush1.bf16.msra.mxu0 0
        %510 = vmatprep.subr.bf16.mxu0 0
        %511 = vmatpush1.bf16.msra.mxu0 0
        %512 = vmatprep.subr.bf16.mxu0 0
        %513 = vmatpush1.bf16.msra.mxu0 0
        %514 = vmatprep.mubr.bf16.mxu0 0
        %515 = vmatmul.mubr.bf16.gmra.mrb[0].mxu0 %v477
        %v516 = vpop.f32.mrb[0].mxu0
        %v517 = vadd.f32 0.0, %v516
        %v518 = vpop.f32.mrb[0].mxu0
        %v519 = vpop.f32.mrb[0].mxu0
        %v520 = vadd.f32 0.0, %v519
        %v521 = vpop.f32.mrb[0].mxu0
        %522 = vmatprep.mubr.bf16.mxu0 0
        %523 = vmatmul.mubr.bf16.gmra.mrb[0].mxu0 %v480
        %v524 = vpop.f32.mrb[0].mxu0
        %v525 = vadd.f32 0.0, %v524
        %v526 = vpop.f32.mrb[0].mxu0
        %v527 = vpop.f32.mrb[0].mxu0
        %v528 = vadd.f32 0.0, %v527
        %v529 = vpop.f32.mrb[0].mxu0
        %530 = vdwg.mxu0
        %v531 = vadd.f32 %v452, %v517
        %v532 = vadd.f32 %v455, %v520
        %v533 = vadd.f32 %v460, %v525
        %v534 = vadd.f32 %v463, %v528
        %v535 = vpack.c.bf16 %v532, %v531
        %v536 = vpack.c.bf16 %v534, %v533
        %v537 = vunpack.c.l.bf16 %v535
        %v538 = vunpack.c.h.bf16 %v535
        %v539 = vunpack.c.l.bf16 %v536
        %v540 = vunpack.c.h.bf16 %v536
        %v541 = vsub.f32 %v531, %v537
        %v542 = vsub.f32 %v532, %v538
        %v543 = vsub.f32 %v533, %v539
        %v544 = vsub.f32 %v534, %v540
        %v545 = vpack.c.bf16 %v542, %v541
        %v546 = vpack.c.bf16 %v544, %v543
        %v563 = vunpack.c.l.b16 %v301
        %v564 = vunpack.c.h.b16 %v301
        %v565 = vunpack.c.l.b16 %v302
        %v566 = vunpack.c.h.b16 %v302
        %v567 = vunpack.c.l.b16 %v303
        %v568 = vunpack.c.h.b16 %v303
        %v569 = vunpack.c.l.b16 %v304
        %v570 = vunpack.c.h.b16 %v304
        %v571 = vunpack.c.l.b16 %v305
        %v572 = vunpack.c.h.b16 %v305
        %v573 = vunpack.c.l.b16 %v306
        %v574 = vunpack.c.h.b16 %v306
        %v575 = vunpack.c.l.b16 %v307
        %v576 = vunpack.c.h.b16 %v307
        %v577 = vunpack.c.l.b16 %v308
        %v578 = vunpack.c.h.b16 %v308
        %v579 = vunpack.c.l.b16 %v309
        %v580 = vunpack.c.h.b16 %v309
        %v581 = vunpack.c.l.b16 %v310
        %v582 = vunpack.c.h.b16 %v310
        %v583 = vunpack.c.l.b16 %v311
        %v584 = vunpack.c.h.b16 %v311
        %v585 = vunpack.c.l.b16 %v312
        %v586 = vunpack.c.h.b16 %v312
        %v587 = vunpack.c.l.b16 %v313
        %v588 = vunpack.c.h.b16 %v313
        %v589 = vunpack.c.l.b16 %v314
        %v590 = vunpack.c.h.b16 %v314
        %v591 = vunpack.c.l.b16 %v315
        %v592 = vunpack.c.h.b16 %v315
        %v593 = vunpack.c.l.b16 %v316
        %v594 = vunpack.c.h.b16 %v316
        %v595 = vpack.c.b16 %v565, %v563
        %v596 = vpack.c.b16 %v566, %v564
        %v597 = vpack.c.b16 %v569, %v567
        %v598 = vpack.c.b16 %v570, %v568
        %v599 = vpack.c.b16 %v573, %v571
        %v600 = vpack.c.b16 %v574, %v572
        %v601 = vpack.c.b16 %v577, %v575
        %v602 = vpack.c.b16 %v578, %v576
        %v603 = vpack.c.b16 %v581, %v579
        %v604 = vpack.c.b16 %v582, %v580
        %v605 = vpack.c.b16 %v585, %v583
        %v606 = vpack.c.b16 %v586, %v584
        %v607 = vpack.c.b16 %v589, %v587
        %v608 = vpack.c.b16 %v590, %v588
        %v609 = vpack.c.b16 %v593, %v591
        %v610 = vpack.c.b16 %v594, %v592
        %627 = vmatprep.subr.bf16.mxu0 %v596
        %628 = vmatpush1.bf16.msra.mxu0 %v595
        %629 = vmatprep.subr.bf16.mxu0 %v598
        %630 = vmatpush1.bf16.msra.mxu0 %v597
        %631 = vmatprep.subr.bf16.mxu0 %v600
        %632 = vmatpush1.bf16.msra.mxu0 %v599
        %633 = vmatprep.subr.bf16.mxu0 %v602
        %634 = vmatpush1.bf16.msra.mxu0 %v601
        %635 = vmatprep.subr.bf16.mxu0 %v604
        %636 = vmatpush1.bf16.msra.mxu0 %v603
        %637 = vmatprep.subr.bf16.mxu0 %v606
        %638 = vmatpush1.bf16.msra.mxu0 %v605
        %639 = vmatprep.subr.bf16.mxu0 %v608
        %640 = vmatpush1.bf16.msra.mxu0 %v607
        %641 = vmatprep.subr.bf16.mxu0 %v610
        %642 = vmatpush1.bf16.msra.mxu0 %v609
        %643 = vmatprep.subr.bf16.mxu0 0
        %644 = vmatpush1.bf16.msra.mxu0 0
        %645 = vmatprep.subr.bf16.mxu0 0
        %646 = vmatpush1.bf16.msra.mxu0 0
        %647 = vmatprep.subr.bf16.mxu0 0
        %648 = vmatpush1.bf16.msra.mxu0 0
        %649 = vmatprep.subr.bf16.mxu0 0
        %650 = vmatpush1.bf16.msra.mxu0 0
        %651 = vmatprep.subr.bf16.mxu0 0
        %652 = vmatpush1.bf16.msra.mxu0 0
        %653 = vmatprep.subr.bf16.mxu0 0
        %654 = vmatpush1.bf16.msra.mxu0 0
        %655 = vmatprep.subr.bf16.mxu0 0
        %656 = vmatpush1.bf16.msra.mxu0 0
        %657 = vmatprep.subr.bf16.mxu0 0
        %658 = vmatpush1.bf16.msra.mxu0 0
        %659 = vmatprep.mubr.bf16.mxu0 0
        %660 = vmatmul.mubr.bf16.gmra.mrb[0].mxu0 %v535
        %v661 = vpop.f32.mrb[0].mxu0
        %v662 = vadd.f32 0.0, %v661
        %v663 = vpop.f32.mrb[0].mxu0
        %v664 = vadd.f32 0.0, %v663
        %v665 = vpop.f32.mrb[0].mxu0
        %v666 = vadd.f32 0.0, %v665
        %v667 = vpop.f32.mrb[0].mxu0
        %v668 = vadd.f32 0.0, %v667
        %669 = vmatprep.mubr.bf16.mxu0 0
        %670 = vmatmul.mubr.bf16.gmra.mrb[0].mxu0 %v536
        %v671 = vpop.f32.mrb[0].mxu0
        %v672 = vadd.f32 0.0, %v671
        %v673 = vpop.f32.mrb[0].mxu0
        %v674 = vadd.f32 0.0, %v673
        %v675 = vpop.f32.mrb[0].mxu0
        %v676 = vadd.f32 0.0, %v675
        %v677 = vpop.f32.mrb[0].mxu0
        %v678 = vadd.f32 0.0, %v677
        %679 = vdwg.mxu0
        %v696 = vunpack.c.l.b16 %v285
        %v697 = vunpack.c.h.b16 %v285
        %v698 = vunpack.c.l.b16 %v286
        %v699 = vunpack.c.h.b16 %v286
        %v700 = vunpack.c.l.b16 %v287
        %v701 = vunpack.c.h.b16 %v287
        %v702 = vunpack.c.l.b16 %v288
        %v703 = vunpack.c.h.b16 %v288
        %v704 = vunpack.c.l.b16 %v289
        %v705 = vunpack.c.h.b16 %v289
        %v706 = vunpack.c.l.b16 %v290
        %v707 = vunpack.c.h.b16 %v290
        %v708 = vunpack.c.l.b16 %v291
        %v709 = vunpack.c.h.b16 %v291
        %v710 = vunpack.c.l.b16 %v292
        %v711 = vunpack.c.h.b16 %v292
        %v712 = vunpack.c.l.b16 %v293
        %v713 = vunpack.c.h.b16 %v293
        %v714 = vunpack.c.l.b16 %v294
        %v715 = vunpack.c.h.b16 %v294
        %v716 = vunpack.c.l.b16 %v295
        %v717 = vunpack.c.h.b16 %v295
        %v718 = vunpack.c.l.b16 %v296
        %v719 = vunpack.c.h.b16 %v296
        %v720 = vunpack.c.l.b16 %v297
        %v721 = vunpack.c.h.b16 %v297
        %v722 = vunpack.c.l.b16 %v298
        %v723 = vunpack.c.h.b16 %v298
        %v724 = vunpack.c.l.b16 %v299
        %v725 = vunpack.c.h.b16 %v299
        %v726 = vunpack.c.l.b16 %v300
        %v727 = vunpack.c.h.b16 %v300
        %v728 = vpack.c.b16 %v698, %v696
        %v729 = vpack.c.b16 %v699, %v697
        %v730 = vpack.c.b16 %v702, %v700
        %v731 = vpack.c.b16 %v703, %v701
        %v732 = vpack.c.b16 %v706, %v704
        %v733 = vpack.c.b16 %v707, %v705
        %v734 = vpack.c.b16 %v710, %v708
        %v735 = vpack.c.b16 %v711, %v709
        %v736 = vpack.c.b16 %v714, %v712
        %v737 = vpack.c.b16 %v715, %v713
        %v738 = vpack.c.b16 %v718, %v716
        %v739 = vpack.c.b16 %v719, %v717
        %v740 = vpack.c.b16 %v722, %v720
        %v741 = vpack.c.b16 %v723, %v721
        %v742 = vpack.c.b16 %v726, %v724
        %v743 = vpack.c.b16 %v727, %v725
        %760 = vmatprep.subr.bf16.mxu0 %v729
        %761 = vmatpush1.bf16.msra.mxu0 %v728
        %762 = vmatprep.subr.bf16.mxu0 %v731
        %763 = vmatpush1.bf16.msra.mxu0 %v730
        %764 = vmatprep.subr.bf16.mxu0 %v733
        %765 = vmatpush1.bf16.msra.mxu0 %v732
        %766 = vmatprep.subr.bf16.mxu0 %v735
        %767 = vmatpush1.bf16.msra.mxu0 %v734
        %768 = vmatprep.subr.bf16.mxu0 %v737
        %769 = vmatpush1.bf16.msra.mxu0 %v736
        %770 = vmatprep.subr.bf16.mxu0 %v739
        %771 = vmatpush1.bf16.msra.mxu0 %v738
        %772 = vmatprep.subr.bf16.mxu0 %v741
        %773 = vmatpush1.bf16.msra.mxu0 %v740
        %774 = vmatprep.subr.bf16.mxu0 %v743
        %775 = vmatpush1.bf16.msra.mxu0 %v742
        %776 = vmatprep.subr.bf16.mxu0 0
        %777 = vmatpush1.bf16.msra.mxu0 0
        %778 = vmatprep.subr.bf16.mxu0 0
        %779 = vmatpush1.bf16.msra.mxu0 0
        %780 = vmatprep.subr.bf16.mxu0 0
        %781 = vmatpush1.bf16.msra.mxu0 0
        %782 = vmatprep.subr.bf16.mxu0 0
        %783 = vmatpush1.bf16.msra.mxu0 0
        %784 = vmatprep.subr.bf16.mxu0 0
        %785 = vmatpush1.bf16.msra.mxu0 0
        %786 = vmatprep.subr.bf16.mxu0 0
        %787 = vmatpush1.bf16.msra.mxu0 0
        %788 = vmatprep.subr.bf16.mxu0 0
        %789 = vmatpush1.bf16.msra.mxu0 0
        %790 = vmatprep.subr.bf16.mxu0 0
        %791 = vmatpush1.bf16.msra.mxu0 0
        %792 = vmatprep.mubr.bf16.mxu0 0
        %793 = vmatmul.mubr.bf16.gmra.mrb[0].mxu0 %v535
        %v794 = vpop.f32.mrb[0].mxu0
        %v795 = vadd.f32 %v662, %v794
        %v796 = vpop.f32.mrb[0].mxu0
        %v797 = vadd.f32 %v664, %v796
        %v798 = vpop.f32.mrb[0].mxu0
        %v799 = vadd.f32 %v666, %v798
        %v800 = vpop.f32.mrb[0].mxu0
        %v801 = vadd.f32 %v668, %v800
        %802 = vmatprep.mubr.bf16.mxu0 0
        %803 = vmatmul.mubr.bf16.gmra.mrb[0].mxu0 %v536
        %v804 = vpop.f32.mrb[0].mxu0
        %v805 = vadd.f32 %v672, %v804
        %v806 = vpop.f32.mrb[0].mxu0
        %v807 = vadd.f32 %v674, %v806
        %v808 = vpop.f32.mrb[0].mxu0
        %v809 = vadd.f32 %v676, %v808
        %v810 = vpop.f32.mrb[0].mxu0
        %v811 = vadd.f32 %v678, %v810
        %812 = vdwg.mxu0
        %813 = vmatprep.subr.bf16.mxu0 %v729
        %814 = vmatpush1.bf16.msra.mxu0 %v728
        %815 = vmatprep.subr.bf16.mxu0 %v731
        %816 = vmatpush1.bf16.msra.mxu0 %v730
        %817 = vmatprep.subr.bf16.mxu0 %v733
        %818 = vmatpush1.bf16.msra.mxu0 %v732
        %819 = vmatprep.subr.bf16.mxu0 %v735
        %820 = vmatpush1.bf16.msra.mxu0 %v734
        %821 = vmatprep.subr.bf16.mxu0 %v737
        %822 = vmatpush1.bf16.msra.mxu0 %v736
        %823 = vmatprep.subr.bf16.mxu0 %v739
        %824 = vmatpush1.bf16.msra.mxu0 %v738
        %825 = vmatprep.subr.bf16.mxu0 %v741
        %826 = vmatpush1.bf16.msra.mxu0 %v740
        %827 = vmatprep.subr.bf16.mxu0 %v743
        %828 = vmatpush1.bf16.msra.mxu0 %v742
        %829 = vmatprep.subr.bf16.mxu0 0
        %830 = vmatpush1.bf16.msra.mxu0 0
        %831 = vmatprep.subr.bf16.mxu0 0
        %832 = vmatpush1.bf16.msra.mxu0 0
        %833 = vmatprep.subr.bf16.mxu0 0
        %834 = vmatpush1.bf16.msra.mxu0 0
        %835 = vmatprep.subr.bf16.mxu0 0
        %836 = vmatpush1.bf16.msra.mxu0 0
        %837 = vmatprep.subr.bf16.mxu0 0
        %838 = vmatpush1.bf16.msra.mxu0 0
        %839 = vmatprep.subr.bf16.mxu0 0
        %840 = vmatpush1.bf16.msra.mxu0 0
        %841 = vmatprep.subr.bf16.mxu0 0
        %842 = vmatpush1.bf16.msra.mxu0 0
        %843 = vmatprep.subr.bf16.mxu0 0
        %844 = vmatpush1.bf16.msra.mxu0 0
        %845 = vmatprep.mubr.bf16.mxu0 0
        %846 = vmatmul.mubr.bf16.gmra.mrb[0].mxu0 %v545
        %v847 = vpop.f32.mrb[0].mxu0
        %v848 = vadd.f32 0.0, %v847
        %v849 = vpop.f32.mrb[0].mxu0
        %v850 = vadd.f32 0.0, %v849
        %v851 = vpop.f32.mrb[0].mxu0
        %v852 = vadd.f32 0.0, %v851
        %v853 = vpop.f32.mrb[0].mxu0
        %v854 = vadd.f32 0.0, %v853
        %855 = vmatprep.mubr.bf16.mxu0 0
        %856 = vmatmul.mubr.bf16.gmra.mrb[0].mxu0 %v546
        %v857 = vpop.f32.mrb[0].mxu0
        %v858 = vadd.f32 0.0, %v857
        %v859 = vpop.f32.mrb[0].mxu0
        %v860 = vadd.f32 0.0, %v859
        %v861 = vpop.f32.mrb[0].mxu0
        %v862 = vadd.f32 0.0, %v861
        %v863 = vpop.f32.mrb[0].mxu0
        %v864 = vadd.f32 0.0, %v863
        %865 = vdwg.mxu0
        %v866 = vadd.f32 %v795, %v848
        %v867 = vadd.f32 %v797, %v850
        %v868 = vadd.f32 %v799, %v852
        %v869 = vadd.f32 %v801, %v854
        %v870 = vadd.f32 %v805, %v858
        %v871 = vadd.f32 %v807, %v860
        %v872 = vadd.f32 %v809, %v862
        %v873 = vadd.f32 %v811, %v864
        %v874 = vsub.f32 %v866, %v871
        %v875 = vsub.f32 %v868, %v873
        %v876 = vadd.f32 %v867, %v870
        %v877 = vadd.f32 %v869, %v872
        %v878 = vmul.f32 %v874, %v874
        %v879 = vmul.f32 %v875, %v875
        %v880 = vmul.f32 %v876, %v876
        %v881 = vmul.f32 %v877, %v877
        %v882 = vadd.f32 %v878, %v880
        %v883 = vadd.f32 %v879, %v881
        %v884 = vrsqrt.pop %v882
        %v885 = vmul.f32 %v882, %v884
        %vm886 = vcmp.eq.f32.partialorder %v882, inf
        %v887 = vsel %vm886, %v882, %v885
        %vm888 = vcmp.eq.f32.partialorder %v882, 0.0
        %v889 = vand.u32 %v882, 2147483648
        %v890 = vsel %vm888, %v889, %v887
        %v891 = vrsqrt.pop %v883
        %v892 = vmul.f32 %v883, %v891
        %vm893 = vcmp.eq.f32.partialorder %v883, inf
        %v894 = vsel %vm893, %v883, %v892
        %vm895 = vcmp.eq.f32.partialorder %v883, 0.0
        %v896 = vand.u32 %v883, 2147483648
        %v897 = vsel %vm895, %v896, %v894
        %v898 = vsel %vm321, 1, 0
        %vm899 = vcmp.eq.s32.totalorder %v898, 1
        %v900 = vsel %vm899, %v890, 0.0
        %v901 = vsel %vm899, %v897, 0.0
        %v902 = vmax.f32 %v900, %v901
        %903 = vmax.xlane.f32.xlu0 %v902
        %v904 = vpop.xlane.xlu0 %903
        %v905 = vrot.slane %v904, 4
        %v906 = vmax.f32 %v904, %v905
        %v907 = vrot.slane %v906, 2
        %v908 = vmax.f32 %v906, %v907
        %v909 = vrot.slane %v908, 1
        %v910 = vmax.f32 %v908, %v909
        %s911 = vtos %v910
        %v912 = vstv %s911
        %v913 = vsel %vm321, %v912, 0.0
        %v914 = vadd.f32 %v913, 0.0
        %v915 = vsel %vm324, 1, 0
        %vm916 = vcmp.eq.s32.totalorder %v915, 1
        %v917 = vsel %vm916, %v890, 0.0
        %v918 = vsel %vm916, %v897, 0.0
        %v919 = vmax.f32 %v917, %v918
        %920 = vmax.xlane.f32.xlu0 %v919
        %v921 = vpop.xlane.xlu0 %920
        %v922 = vrot.slane %v921, 4
        %v923 = vmax.f32 %v921, %v922
        %v924 = vrot.slane %v923, 2
        %v925 = vmax.f32 %v923, %v924
        %v926 = vrot.slane %v925, 1
        %v927 = vmax.f32 %v925, %v926
        %s928 = vtos %v927
        %v929 = vstv %s928
        %v930 = vsel %vm324, %v929, 0.0
        %v931 = vadd.f32 %v914, %v930
        %v932 = vsel %vm327, 1, 0
        %vm933 = vcmp.eq.s32.totalorder %v932, 1
        %v934 = vsel %vm933, %v890, 0.0
        %v935 = vsel %vm933, %v897, 0.0
        %v936 = vmax.f32 %v934, %v935
        %937 = vmax.xlane.f32.xlu0 %v936
        %v938 = vpop.xlane.xlu0 %937
        %v939 = vrot.slane %v938, 4
        %v940 = vmax.f32 %v938, %v939
        %v941 = vrot.slane %v940, 2
        %v942 = vmax.f32 %v940, %v941
        %v943 = vrot.slane %v942, 1
        %v944 = vmax.f32 %v942, %v943
        %s945 = vtos %v944
        %v946 = vstv %s945
        %v947 = vsel %vm327, %v946, 0.0
        %v948 = vadd.f32 %v931, %v947
        %v949 = vsel %vm330, 1, 0
        %vm950 = vcmp.eq.s32.totalorder %v949, 1
        %v951 = vsel %vm950, %v890, 0.0
        %v952 = vsel %vm950, %v897, 0.0
        %v953 = vmax.f32 %v951, %v952
        %954 = vmax.xlane.f32.xlu0 %v953
        %v955 = vpop.xlane.xlu0 %954
        %v956 = vrot.slane %v955, 4
        %v957 = vmax.f32 %v955, %v956
        %v958 = vrot.slane %v957, 2
        %v959 = vmax.f32 %v957, %v958
        %v960 = vrot.slane %v959, 1
        %v961 = vmax.f32 %v959, %v960
        %s962 = vtos %v961
        %v963 = vstv %s962
        %v964 = vsel %vm330, %v963, 0.0
        %v965 = vadd.f32 %v948, %v964
        %v966 = vsel %vm333, 1, 0
        %vm967 = vcmp.eq.s32.totalorder %v966, 1
        %v968 = vsel %vm967, %v890, 0.0
        %v969 = vsel %vm967, %v897, 0.0
        %v970 = vmax.f32 %v968, %v969
        %971 = vmax.xlane.f32.xlu0 %v970
        %v972 = vpop.xlane.xlu0 %971
        %v973 = vrot.slane %v972, 4
        %v974 = vmax.f32 %v972, %v973
        %v975 = vrot.slane %v974, 2
        %v976 = vmax.f32 %v974, %v975
        %v977 = vrot.slane %v976, 1
        %v978 = vmax.f32 %v976, %v977
        %s979 = vtos %v978
        %v980 = vstv %s979
        %v981 = vsel %vm333, %v980, 0.0
        %v982 = vadd.f32 %v965, %v981
        %v983 = vsel %vm336, 1, 0
        %vm984 = vcmp.eq.s32.totalorder %v983, 1
        %v985 = vsel %vm984, %v890, 0.0
        %v986 = vsel %vm984, %v897, 0.0
        %v987 = vmax.f32 %v985, %v986
        %988 = vmax.xlane.f32.xlu0 %v987
        %v989 = vpop.xlane.xlu0 %988
        %v990 = vrot.slane %v989, 4
        %v991 = vmax.f32 %v989, %v990
        %v992 = vrot.slane %v991, 2
        %v993 = vmax.f32 %v991, %v992
        %v994 = vrot.slane %v993, 1
        %v995 = vmax.f32 %v993, %v994
        %s996 = vtos %v995
        %v997 = vstv %s996
        %v998 = vsel %vm336, %v997, 0.0
        %v999 = vadd.f32 %v982, %v998
        %v1000 = vsel %vm339, 1, 0
        %vm1001 = vcmp.eq.s32.totalorder %v1000, 1
        %v1002 = vsel %vm1001, %v890, 0.0
        %v1003 = vsel %vm1001, %v897, 0.0
        %v1004 = vmax.f32 %v1002, %v1003
        %1005 = vmax.xlane.f32.xlu0 %v1004
        %v1006 = vpop.xlane.xlu0 %1005
        %v1007 = vrot.slane %v1006, 4
        %v1008 = vmax.f32 %v1006, %v1007
        %v1009 = vrot.slane %v1008, 2
        %v1010 = vmax.f32 %v1008, %v1009
        %v1011 = vrot.slane %v1010, 1
        %v1012 = vmax.f32 %v1010, %v1011
        %s1013 = vtos %v1012
        %v1014 = vstv %s1013
        %v1015 = vsel %vm339, %v1014, 0.0
        %v1016 = vadd.f32 %v999, %v1015
        %v1017 = vsel %vm342, 1, 0
        %vm1018 = vcmp.eq.s32.totalorder %v1017, 1
        %v1019 = vsel %vm1018, %v890, 0.0
        %v1020 = vsel %vm1018, %v897, 0.0
        %v1021 = vmax.f32 %v1019, %v1020
        %1022 = vmax.xlane.f32.xlu0 %v1021
        %v1023 = vpop.xlane.xlu0 %1022
        %v1024 = vrot.slane %v1023, 4
        %v1025 = vmax.f32 %v1023, %v1024
        %v1026 = vrot.slane %v1025, 2
        %v1027 = vmax.f32 %v1025, %v1026
        %v1028 = vrot.slane %v1027, 1
        %v1029 = vmax.f32 %v1027, %v1028
        %s1030 = vtos %v1029
        %v1031 = vstv %s1030
        %v1032 = vsel %vm342, %v1031, 0.0
        %v1033 = vadd.f32 %v1016, %v1032
        %v1034 = vrcp.pop %v1033
        %v1035 = vmul.f32 %v890, %v1034
        %v1036 = vmul.f32 %v897, %v1034
        %vm1037 = vcmp.ne.f32.partialorder %v1035, %v1035
        %vm1038 = vcmp.ne.f32.partialorder %v1036, %v1036
        %v1039 = vsel %vm1037, 0.0, %v1035
        %v1040 = vsel %vm1038, 0.0, %v1036
        %v1041 = vmax.f32 %v1039, 0.0
        %v1042 = vmax.f32 %v1040, 0.0
        %v1043 = vmin.f32 %v1041, 1.0
        %v1044 = vmin.f32 %v1042, 1.0
        %v1045 = vmul.f32 %v1043, %v882
        %v1046 = vmul.f32 %v1044, %v883
        %v1047 = vadd.f32 %v1045, %v1046
        %1048 = vadd.xlane.f32.xlu0 %v1047
        %v1049 = vpop.xlane.xlu0 %1048
        %v1050 = vrot.slane %v1049, 4
        %v1051 = vadd.f32 %v1049, %v1050
        %v1052 = vrot.slane %v1051, 2
        %v1053 = vadd.f32 %v1051, %v1052
        %v1054 = vrot.slane %v1053, 1
        %v1055 = vadd.f32 %v1053, %v1054
        %s1056 = vtos %v1055
        %s1057 = sadd.f32 %s1056, 0.0
        %v1058 = vld [vmem:[#allocation2] sm:$0x1]
        %v1059 = vstv %s1057
        %v1060 = vadd.f32 %v1058, %v1059
        %1061 = vst [vmem:[#allocation2] sm:$0x1] %v1060
        // Predicated region
        $region53: #{tpu_custom_call.1} parent=39 // pred_check
          %p1062 = pneg %p272
        $region54: #{tpu_custom_call.1} parent=39 // pred_check_branch
          %1064 = sbr.rel (%p1062) target = $region56
        $region55: #{tpu_custom_call.1} parent=39 // pred_region
          %v1065 = vld [vmem:[#allocation2] sm:$0x1]
          %v1066 = vmul.f32 %v1065, 0.00048828125
          %1067 = vst [vmem:[%s263] sm:$0x1] %v1066
        $region56: #{tpu_custom_call.1} parent=39 // pred_fallthru
          _
        %s1068 = sand.u32 %s153, 1
        %s1069 = scalar_lea.sflag [#allocation5], %s1068
        %s1070 = sand.u32 %s153, 1
        %s1071 = scalar_lea.vmem [#allocation8], %s1070
        // Predicated region
        $region57: #{tpu_custom_call.1} parent=39 // pred_check
          %p1072 = pneg %p163
        $region58: #{tpu_custom_call.1} parent=39 // pred_check_branch
          %1074 = sbr.rel (%p1072) target = $region60
        $region59: #{tpu_custom_call.1} parent=39 // pred_region
          %s1076 = ssub.s32 16, 16
          %1077 = vsyncadd %s1069, %s1076
          %s1078 = smul.addr %s25, 16
          %s1079 = scalar_lea.hbm %s5, %s1078
          %s1081 = sshll.u32 %s1071, 4
          %s1082 = int_to_ptr.vmem [resolvable:$true] %s1081
          %1084 = dma.vmem_to_hbm [thread:$0]  %s1082, 16, %s1079, %s1069
        $region60: #{tpu_custom_call.1} parent=39 // pred_fallthru
          _
      $region40: #{tpu_custom_call.1} parent=5 // pred_fallthru
        _
      %p1085 = scmp.le.s32.totalorder 2, %s16
      // Predicated region
      $region61: #{tpu_custom_call.1} parent=5 // pred_check
        %p1086 = pneg %p1085
      $region62: #{tpu_custom_call.1} parent=5 // pred_check_branch
        %1088 = sbr.rel (%p1086) target = $region64
      $region63: #{tpu_custom_call.1} parent=5 // pred_region
        %s1089 = ssub.s32 %s16, 2
        // Predicated region
        $region65: #{tpu_custom_call.1} parent=63 // pred_check
          %p1090 = pneg %p169
        $region66: #{tpu_custom_call.1} parent=63 // pred_check_branch
          %1092 = sbr.rel (%p1090) target = $region68
        $region67: #{tpu_custom_call.1} parent=63 // pred_region
          %s1093 = sand.u32 %s154, 1
          %s1094 = scalar_lea.sflag [#allocation5], %s1093
          %s1095 = sand.u32 %s154, 1
          %s1096 = scalar_lea.vmem [#allocation8], %s1095
          %1097 = dma.done %s1094, 16
        $region68: #{tpu_custom_call.1} parent=63 // pred_fallthru
          _
      $region64: #{tpu_custom_call.1} parent=5 // pred_fallthru
        _
    $region6: #{tpu_custom_call.1} parent=1 // loop_footer
      %s20 = sadd.s32 1, %s16
    $region7: #{tpu_custom_call.1} parent=1 // loop_footer_branch
      %15 = sbr.rel target = $region3
    $region8: #{tpu_custom_call.1} parent=1 // loop_exit
      _
    %1098 = vsyncpa [#allocation4], 1
    %s1099 = scalar_lea.sflag [#allocation4], 1
    %1100 = vsyncpa %s1099, 1
    %1101 = vsyncpa [#allocation7], 1
    %1102 = vsyncpa [#allocation5], 1
    %s1103 = scalar_lea.sflag [#allocation5], 1
    %1104 = vsyncpa %s1103, 1

</llo_original>
